<compile_context>
chip_gen: v7x
topology: tpu7x:2x2x1
jax: 0.10.0
libtpu: 0.0.40
codegen_flags: <defaults>
</compile_context>

<pallas_src>
import functools

import jax
import jax.numpy as jnp
from jax.experimental import pallas as pl
from jax.experimental.pallas import tpu as pltpu


def _round_up(x, m):
    return ((x + m - 1) // m) * m


# ----------------------------- Pallas kernel ------------------------------

def _conv_bn_kernel(x_ref, w_ref, b_ref, o_ref, *, K, stride, dilation, Ho, Wo):
    # x_ref: (Hp, Wp, C)      padded NHWC input for one sample, bf16
    # w_ref: (K*K*C, Opad)    conv weight with BN scale folded in, bf16
    # b_ref: (1, Opad)        folded BN bias, f32
    # o_ref: (Ho*Wo, Opad)    f32 output slab (channel-padded, lane-dense)
    C = x_ref.shape[-1]
    Opad = o_ref.shape[-1]

    # Gather the K*K shifted windows (static, unrolled) and build an
    # in-VMEM patch matrix; tap order (kh, kw, c) matches the weight layout.
    taps = []
    for kh in range(K):
        for kw in range(K):
            h0 = kh * dilation
            w0 = kw * dilation
            if stride == 1:
                win = x_ref[h0:h0 + Ho, w0:w0 + Wo, :]
            else:
                # TODO(synk): stride>1 loads the dense window then subsamples
                # in-register; a phase-decomposed layout would avoid the
                # extra loads.  (Not exercised by the demo config.)
                full = x_ref[h0:h0 + (Ho - 1) * stride + 1,
                             w0:w0 + (Wo - 1) * stride + 1, :]
                win = jax.lax.slice(full, (0, 0, 0), full.shape,
                                    (stride, stride, 1))
            taps.append(win)                               # (Ho, Wo, C)

    patches = jnp.concatenate(taps, axis=-1)               # (Ho, Wo, K*K*C)
    patches = patches.reshape(Ho * Wo, K * K * C)

    # Single MXU matmul, f32 accumulation.
    acc = jnp.dot(patches, w_ref[...], preferred_element_type=jnp.float32)
    out = acc + b_ref[...]                                  # (+ (1, Opad) bias)
    o_ref[...] = out.astype(o_ref.dtype)


# ----------------------------- Module wrapper ------------------------------

class BasicConv2dPallas:
    """Pallas equivalent of BasicConv2d: Conv2d(bias=False) + BatchNorm2d."""

    def __init__(self, in_planes, out_planes, kernel_size,
                 stride=1, padding=0, dilation=1, *, key):
        self.in_planes = in_planes
        self.out_planes = out_planes
        self.kernel_size = kernel_size
        self.stride = stride
        self.padding = padding
        self.dilation = dilation
        self.eps = 1e-5

        k_w, k_g, k_b = jax.random.split(key, 3)
        fan_in = in_planes * kernel_size * kernel_size
        bound = 1.0 / (fan_in ** 0.5)
        # Conv weight (O, C, KH, KW) -- deterministic synthetic init.
        self.weight = jax.random.uniform(
            k_w, (out_planes, in_planes, kernel_size, kernel_size),
            minval=-bound, maxval=bound, dtype=jnp.float32)
        # BatchNorm params (inference mode).
        self.gamma = 1.0 + 0.1 * jax.random.normal(k_g, (out_planes,), jnp.float32)
        self.beta = 0.1 * jax.random.normal(k_b, (out_planes,), jnp.float32)
        self.running_mean = jnp.zeros((out_planes,), jnp.float32)
        self.running_var = jnp.ones((out_planes,), jnp.float32)

        # --- Precompute kernel operands: fold BN scale into the weight, pad
        # --- output channels to a lane-dense multiple of 128, cast to bf16.
        scale = self.gamma / jnp.sqrt(self.running_var + self.eps)     # (O,)
        bias = self.beta - self.running_mean * scale                   # (O,)
        self.o_pad = _round_up(out_planes, 128)

        w = self.weight * scale[:, None, None, None]                   # (O,C,K,K)
        w = jnp.transpose(w, (2, 3, 1, 0))                             # (K,K,C,O)
        w = w.reshape(kernel_size * kernel_size * in_planes, out_planes)
        w = jnp.pad(w, ((0, 0), (0, self.o_pad - out_planes)))
        self.w_folded = w.astype(jnp.bfloat16)                         # (K*K*C,Opad)
        self.bias_folded = jnp.pad(
            bias, (0, self.o_pad - out_planes)
        ).reshape(1, self.o_pad).astype(jnp.float32)                   # (1,Opad)

    def __call__(self, x):
        # x: (N, C, H, W) float32 -- PyTorch layout at the API boundary.
        N, C, H, W = x.shape
        K, s, p, d = self.kernel_size, self.stride, self.padding, self.dilation
        Ho = (H + 2 * p - d * (K - 1) - 1) // s + 1
        Wo = (W + 2 * p - d * (K - 1) - 1) // s + 1
        Hp, Wp = H + 2 * p, W + 2 * p

        # NHWC internally; bf16 matmul operands, f32 accumulation in-kernel.
        x_nhwc = jnp.transpose(x, (0, 2, 3, 1))
        x_pad = jnp.pad(x_nhwc, ((0, 0), (p, p), (p, p), (0, 0)))
        x_pad = x_pad.astype(jnp.bfloat16)

        kernel = functools.partial(
            _conv_bn_kernel, K=K, stride=s, dilation=d, Ho=Ho, Wo=Wo)

        out = pl.pallas_call(
            kernel,
            out_shape=jax.ShapeDtypeStruct((N, Ho * Wo, self.o_pad), jnp.float32),
            grid_spec=pltpu.PrefetchScalarGridSpec(
                num_scalar_prefetch=0,
                grid=(N,),
                in_specs=[
                    pl.BlockSpec((None, Hp, Wp, C), lambda n: (n, 0, 0, 0)),
                    pl.BlockSpec((K * K * C, self.o_pad), lambda n: (0, 0)),
                    pl.BlockSpec((1, self.o_pad), lambda n: (0, 0)),
                ],
                out_specs=pl.BlockSpec((None, Ho * Wo, self.o_pad),
                                       lambda n: (n, 0, 0)),
            ),
            compiler_params=pltpu.CompilerParams(
                dimension_semantics=("parallel",),
                vmem_limit_bytes=64 * 1024 * 1024),
        )(x_pad, self.w_folded, self.bias_folded)

        # Drop channel padding, restore spatial dims, return to NCHW
        # (single fused XLA copy; pure layout plumbing, no compute).
        out = out[..., :self.out_planes].reshape(N, Ho, Wo, self.out_planes)
        return jnp.transpose(out, (0, 3, 1, 2))            # (N, O, Ho, Wo)


# ----------------------------- Reference check ------------------------------

def _reference(x, mod: BasicConv2dPallas):
    y = jax.lax.conv_general_dilated(
        x, mod.weight,
        window_strides=(mod.stride, mod.stride),
        padding=[(mod.padding, mod.padding)] * 2,
        rhs_dilation=(mod.dilation, mod.dilation),
        dimension_numbers=("NCHW", "OIHW", "NCHW"))
    scale = mod.gamma / jnp.sqrt(mod.running_var + mod.eps)
    bias = mod.beta - mod.running_mean * scale
    return y * scale[None, :, None, None] + bias[None, :, None, None]


if __name__ == "__main__":
    key = jax.random.PRNGKey(0)
    k_x, k_m = jax.random.split(key)

    N, C, H, W = 2, 4, 16, 16
    out_planes, ksize, pad = 8, 3, 1

    x = jax.random.normal(k_x, (N, C, H, W), jnp.float32)
    mod = BasicConv2dPallas(C, out_planes, ksize, stride=1, padding=pad,
                            dilation=1, key=k_m)

    y = jax.block_until_ready(mod(x))

    y_ref = jax.block_until_ready(_reference(x, mod))
    assert y.shape == (N, out_planes, H, W), y.shape
    max_err = float(jnp.max(jnp.abs(y - y_ref)))
    # bf16 matmul operands vs f32 reference -> relaxed tolerance.
    assert jnp.allclose(y, y_ref, atol=2e-2, rtol=2e-2), max_err

    print("KERNEL_OK")
</pallas_src>

<mosaic_0001>
module attributes {stable_mosaic.version = 11 : i64} {
  func.func @_conv_bn_kernel(%arg0: i32, %arg1: memref<1x18x18x4xbf16, #tpu.memory_space<vmem>>, %arg2: memref<36x128xbf16, #tpu.memory_space<vmem>>, %arg3: memref<1x128xf32, #tpu.memory_space<vmem>>, %arg4: memref<1x256x128xf32, #tpu.memory_space<vmem>>) attributes {dimension_semantics = [#tpu.dimension_semantics<parallel>], iteration_bounds = array<i64: 2>, scalar_prefetch = 0 : i64, scratch_operands = 0 : i64, tpu.core_type = #tpu.core_type<tc>, window_params = [{transform_indices = @transform_0, window_bounds = array<i64: 1, 18, 18, 4>}, {pipeline_mode = #tpu.pipeline_mode<synchronous>, transform_indices = @transform_1, window_bounds = array<i64: 36, 128>}, {pipeline_mode = #tpu.pipeline_mode<synchronous>, transform_indices = @transform_2, window_bounds = array<i64: 1, 128>}, {transform_indices = @transform_3, window_bounds = array<i64: 1, 256, 128>}]} {
    %c0 = arith.constant 0 : index
    %c0_0 = arith.constant 0 : index
    %c0_1 = arith.constant 0 : index
    %c0_2 = arith.constant 0 : index
    %0 = vector.load %arg1[%c0, %c0_0, %c0_1, %c0_2] : memref<1x18x18x4xbf16, #tpu.memory_space<vmem>>, vector<1x16x16x4xbf16>
    %1 = vector.shape_cast %0 : vector<1x16x16x4xbf16> to vector<16x16x4xbf16>
    %c0_3 = arith.constant 0 : index
    %c0_4 = arith.constant 0 : index
    %c1 = arith.constant 1 : index
    %c0_5 = arith.constant 0 : index
    %2 = vector.load %arg1[%c0_3, %c0_4, %c1, %c0_5] : memref<1x18x18x4xbf16, #tpu.memory_space<vmem>>, vector<1x16x16x4xbf16>
    %3 = vector.shape_cast %2 : vector<1x16x16x4xbf16> to vector<16x16x4xbf16>
    %c0_6 = arith.constant 0 : index
    %c0_7 = arith.constant 0 : index
    %c2 = arith.constant 2 : index
    %c0_8 = arith.constant 0 : index
    %4 = vector.load %arg1[%c0_6, %c0_7, %c2, %c0_8] : memref<1x18x18x4xbf16, #tpu.memory_space<vmem>>, vector<1x16x16x4xbf16>
    %5 = vector.shape_cast %4 : vector<1x16x16x4xbf16> to vector<16x16x4xbf16>
    %c0_9 = arith.constant 0 : index
    %c1_10 = arith.constant 1 : index
    %c0_11 = arith.constant 0 : index
    %c0_12 = arith.constant 0 : index
    %6 = vector.load %arg1[%c0_9, %c1_10, %c0_11, %c0_12] : memref<1x18x18x4xbf16, #tpu.memory_space<vmem>>, vector<1x16x16x4xbf16>
    %7 = vector.shape_cast %6 : vector<1x16x16x4xbf16> to vector<16x16x4xbf16>
    %c0_13 = arith.constant 0 : index
    %c1_14 = arith.constant 1 : index
    %c1_15 = arith.constant 1 : index
    %c0_16 = arith.constant 0 : index
    %8 = vector.load %arg1[%c0_13, %c1_14, %c1_15, %c0_16] : memref<1x18x18x4xbf16, #tpu.memory_space<vmem>>, vector<1x16x16x4xbf16>
    %9 = vector.shape_cast %8 : vector<1x16x16x4xbf16> to vector<16x16x4xbf16>
    %c0_17 = arith.constant 0 : index
    %c1_18 = arith.constant 1 : index
    %c2_19 = arith.constant 2 : index
    %c0_20 = arith.constant 0 : index
    %10 = vector.load %arg1[%c0_17, %c1_18, %c2_19, %c0_20] : memref<1x18x18x4xbf16, #tpu.memory_space<vmem>>, vector<1x16x16x4xbf16>
    %11 = vector.shape_cast %10 : vector<1x16x16x4xbf16> to vector<16x16x4xbf16>
    %c0_21 = arith.constant 0 : index
    %c2_22 = arith.constant 2 : index
    %c0_23 = arith.constant 0 : index
    %c0_24 = arith.constant 0 : index
    %12 = vector.load %arg1[%c0_21, %c2_22, %c0_23, %c0_24] : memref<1x18x18x4xbf16, #tpu.memory_space<vmem>>, vector<1x16x16x4xbf16>
    %13 = vector.shape_cast %12 : vector<1x16x16x4xbf16> to vector<16x16x4xbf16>
    %c0_25 = arith.constant 0 : index
    %c2_26 = arith.constant 2 : index
    %c1_27 = arith.constant 1 : index
    %c0_28 = arith.constant 0 : index
    %14 = vector.load %arg1[%c0_25, %c2_26, %c1_27, %c0_28] : memref<1x18x18x4xbf16, #tpu.memory_space<vmem>>, vector<1x16x16x4xbf16>
    %15 = vector.shape_cast %14 : vector<1x16x16x4xbf16> to vector<16x16x4xbf16>
    %c0_29 = arith.constant 0 : index
    %c2_30 = arith.constant 2 : index
    %c2_31 = arith.constant 2 : index
    %c0_32 = arith.constant 0 : index
    %16 = vector.load %arg1[%c0_29, %c2_30, %c2_31, %c0_32] : memref<1x18x18x4xbf16, #tpu.memory_space<vmem>>, vector<1x16x16x4xbf16>
    %17 = vector.shape_cast %16 : vector<1x16x16x4xbf16> to vector<16x16x4xbf16>
    %18 = tpu.concatenate %1, %3, %5, %7, %9, %11, %13, %15, %17 in 2 : vector<16x16x4xbf16>, vector<16x16x4xbf16>, vector<16x16x4xbf16>, vector<16x16x4xbf16>, vector<16x16x4xbf16>, vector<16x16x4xbf16>, vector<16x16x4xbf16>, vector<16x16x4xbf16>, vector<16x16x4xbf16> -> vector<16x16x36xbf16>
    %19 = vector.shape_cast %18 : vector<16x16x36xbf16> to vector<256x36xbf16>
    %c0_33 = arith.constant 0 : index
    %c0_34 = arith.constant 0 : index
    %20 = vector.load %arg2[%c0_33, %c0_34] : memref<36x128xbf16, #tpu.memory_space<vmem>>, vector<36x128xbf16>
    %cst = arith.constant dense<0.000000e+00> : vector<256x128xf32>
    %21 = tpu.matmul %19, %20, %cst {dimension_numbers = #tpu.dot_dimension_numbers<[1], [0], [0], [1], [0, 0, 1, 1], [], []>} : vector<256x36xbf16>, vector<36x128xbf16>, vector<256x128xf32> -> vector<256x128xf32>
    %c0_35 = arith.constant 0 : index
    %c0_36 = arith.constant 0 : index
    %22 = vector.load %arg3[%c0_35, %c0_36] : memref<1x128xf32, #tpu.memory_space<vmem>>, vector<1x128xf32>
    %23 = vector.broadcast %22 : vector<1x128xf32> to vector<256x128xf32>
    %24 = arith.addf %21, %23 : vector<256x128xf32>
    %c0_37 = arith.constant 0 : index
    %c0_38 = arith.constant 0 : index
    %c0_39 = arith.constant 0 : index
    %25 = vector.load %arg4[%c0_37, %c0_38, %c0_39] : memref<1x256x128xf32, #tpu.memory_space<vmem>>, vector<1x256x128xf32>
    %26 = vector.shape_cast %25 : vector<1x256x128xf32> to vector<256x128xf32>
    %27 = vector.shape_cast %24 : vector<256x128xf32> to vector<1x256x128xf32>
    tpu.vector_store %arg4[%c0_37, %c0_38, %c0_39], %27 {strides = array<i32>} : memref<1x256x128xf32, #tpu.memory_space<vmem>>, vector<1x256x128xf32>,
    return
  }
  func.func @transform_0(%arg0: i32) -> (i32, i32, i32, i32) {
    %c0_i32 = arith.constant 0 : i32
    %c0_i32_0 = arith.constant 0 : i32
    %c0_i32_1 = arith.constant 0 : i32
    %c0_i32_2 = arith.constant 0 : i32
    return %arg0, %c0_i32, %c0_i32_0, %c0_i32_1 : i32, i32, i32, i32
  }
  func.func @transform_1(%arg0: i32) -> (i32, i32) {
    %c0_i32 = arith.constant 0 : i32
    %c0_i32_0 = arith.constant 0 : i32
    %c0_i32_1 = arith.constant 0 : i32
    return %c0_i32, %c0_i32_0 : i32, i32
  }
  func.func @transform_2(%arg0: i32) -> (i32, i32) {
    %c0_i32 = arith.constant 0 : i32
    %c0_i32_0 = arith.constant 0 : i32
    %c0_i32_1 = arith.constant 0 : i32
    return %c0_i32, %c0_i32_0 : i32, i32
  }
  func.func @transform_3(%arg0: i32) -> (i32, i32, i32) {
    %c0_i32 = arith.constant 0 : i32
    %c0_i32_0 = arith.constant 0 : i32
    %c0_i32_1 = arith.constant 0 : i32
    return %arg0, %c0_i32, %c0_i32_0 : i32, i32, i32
  }
}

</mosaic_0001>

<llo_original>
// kernel: tpu_custom_call.1
$region0: #{tpu_custom_call.1}
  #allocation0 [shape = 'u32[]', space=smem, size = 0x4, offset = 0x4, fixed_abs, tag = 'smem constant byte address 0x4 - core index']
  #allocation1 [shape = 'u32[144,128]{1,0:T(1,128)}', space=vmem, size = 0x12000, scoped, tag = 'internal scratch']
  %s0 = inlined_call_operand.hbm [shape: bf16[2,18,18,4], index: 0, kind: input, shape index: {}]
  %s1 = inlined_call_operand.hbm [shape: bf16[36,128], index: 1, kind: input, shape index: {}]
  %s2 = inlined_call_operand.hbm [shape: f32[1,128], index: 2, kind: input, shape index: {}]
  %s3 = inlined_call_operand.hbm [shape: f32[2,256,128], index: 3, kind: output, shape index: {}]
  %s4 = sld [smem:[#allocation0]]
  $region57: #{tpu_custom_call.1} parent=0
    _
  %s6 = ssub.s32 1, %s4
  %s7 = scalar_select 0, %s6, %s4
  $region1: #{tpu_custom_call.1} parent=0
    #allocation2 [shape = 'u8[221184]{0}', space=vmem, size = 0x36000, scoped, tag = 'input window, operand 0']
    #allocation3 [shape = 's32[2]{0}', space=sflag, size = 0x8, scoped, tag = 'scoped memory for tpu_custom_call.1']
    #allocation4 [shape = 's32[2]{0}', space=sflag, size = 0x8, scoped, tag = 'scoped memory for tpu_custom_call.1']
    #allocation5 [shape = 'u8[10240]{0}', space=vmem, size = 0x2800, scoped, tag = 'input window, operand 1, single buffered']
    #allocation6 [shape = 's32[1]{0}', space=sflag, size = 0x4, scoped, tag = 'scoped memory for tpu_custom_call.1']
    #allocation7 [shape = 'u8[512]{0}', space=vmem, size = 0x400, scoped, tag = 'input window, operand 2, single buffered']
    #allocation8 [shape = 'u8[262144]{0}', space=vmem, size = 0x40000, scoped, tag = 'output window, operand 0']
    %8 = vsyncpa [#allocation3], 0
    %s9 = scalar_lea.sflag [#allocation3], 1
    %10 = vsyncpa %s9, 0
    %11 = vsyncpa [#allocation6], 0
    %12 = vsyncpa [#allocation4], 0
    %s13 = scalar_lea.sflag [#allocation4], 1
    %14 = vsyncpa %s13, 0
    loop: start=0, step=1, limit=4
    $region2: #{tpu_custom_call.1} parent=1 // loop_pre_header
      _
    $region3: #{tpu_custom_call.1} parent=1 // loop_header
      %s16 = sphi 0, %s20
      %p17 = scmp.ge.s32.totalorder %s16, 4
      %s26 = sphi 0, %s28
      %s29 = sphi 0, %s26
      %s30 = sphi 0, %s29
      %s46 = sphi 0, %s30
      %s50 = sphi 0, %s50
      %s52 = sphi 0, %s50
      %s53 = sphi 0, %s52
      %s67 = sphi 0, %s53
      %s71 = sphi 0, %s71
      %s73 = sphi 0, %s71
      %s74 = sphi 0, %s73
      %s88 = sphi 0, %s74
      %s94 = sphi 0, %s96
      %s97 = sphi 0, %s94
      %s98 = sphi 0, %s97
      %s114 = sphi 0, %s98
    $region4: #{tpu_custom_call.1} parent=1 // loop_header_branch
      %19 = sbr.rel (%p17) target = $region8
    $region5: #{tpu_custom_call.1} parent=1 // loop_body
      %s21 = ssub.s32 %s16, 1
      %s22 = ssub.s32 %s16, 2
      %s23 = sadd.s32 %s16, 1
      %s24 = ssub.s32 %s16, %s23
      %p25 = scmp.eq.s32.totalorder %s24, 0
      %s27 = sadd.s32 %s26, 1
      %s28 = scalar_select %p25, %s26, %s27
      %p31 = pneg %p25
      %p32 = scmp.eq.s32.totalorder %s16, 1
      %p33 = por %p31, %p32
      %p34 = scmp.ne.s32.totalorder %s26, %s29
      %p35 = scmp.eq.s32.totalorder %s16, 0
      %p36 = por %p34, %p35
      %p37 = scmp.ne.s32.totalorder %s26, %s29
      %p38 = scmp.eq.s32.totalorder %s21, 1
      %p39 = por %p37, %p38
      %p40 = scmp.ne.s32.totalorder %s29, %s30
      %p41 = scmp.eq.s32.totalorder %s21, 0
      %p42 = por %p40, %p41
      %p43 = scmp.ne.s32.totalorder %s29, %s30
      %p44 = scmp.eq.s32.totalorder %s22, 1
      %p45 = por %p43, %p44
      %p47 = scmp.ne.s32.totalorder %s30, %s46
      %p48 = scmp.eq.s32.totalorder %s22, 0
      %p49 = por %p47, %p48
      %s51 = sadd.s32 %s50, 1
      %p54 = scmp.eq.s32.totalorder %s16, 1
      %p55 = scmp.ne.s32.totalorder %s50, %s52
      %p56 = scmp.eq.s32.totalorder %s16, 0
      %p57 = por %p55, %p56
      %p58 = scmp.ne.s32.totalorder %s50, %s52
      %p59 = scmp.eq.s32.totalorder %s21, 1
      %p60 = por %p58, %p59
      %p61 = scmp.ne.s32.totalorder %s52, %s53
      %p62 = scmp.eq.s32.totalorder %s21, 0
      %p63 = por %p61, %p62
      %p64 = scmp.ne.s32.totalorder %s52, %s53
      %p65 = scmp.eq.s32.totalorder %s22, 1
      %p66 = por %p64, %p65
      %p68 = scmp.ne.s32.totalorder %s53, %s67
      %p69 = scmp.eq.s32.totalorder %s22, 0
      %p70 = por %p68, %p69
      %s72 = sadd.s32 %s71, 1
      %p75 = scmp.eq.s32.totalorder %s16, 1
      %p76 = scmp.ne.s32.totalorder %s71, %s73
      %p77 = scmp.eq.s32.totalorder %s16, 0
      %p78 = por %p76, %p77
      %p79 = scmp.ne.s32.totalorder %s71, %s73
      %p80 = scmp.eq.s32.totalorder %s21, 1
      %p81 = por %p79, %p80
      %p82 = scmp.ne.s32.totalorder %s73, %s74
      %p83 = scmp.eq.s32.totalorder %s21, 0
      %p84 = por %p82, %p83
      %p85 = scmp.ne.s32.totalorder %s73, %s74
      %p86 = scmp.eq.s32.totalorder %s22, 1
      %p87 = por %p85, %p86
      %p89 = scmp.ne.s32.totalorder %s74, %s88
      %p90 = scmp.eq.s32.totalorder %s22, 0
      %p91 = por %p89, %p90
      %s92 = ssub.s32 %s16, %s23
      %p93 = scmp.eq.s32.totalorder %s92, 0
      %s95 = sadd.s32 %s94, 1
      %s96 = scalar_select %p93, %s94, %s95
      %p99 = pneg %p93
      %p100 = scmp.eq.s32.totalorder %s16, 1
      %p101 = por %p99, %p100
      %p102 = scmp.ne.s32.totalorder %s94, %s97
      %p103 = scmp.eq.s32.totalorder %s16, 0
      %p104 = por %p102, %p103
      %p105 = scmp.ne.s32.totalorder %s94, %s97
      %p106 = scmp.eq.s32.totalorder %s21, 1
      %p107 = por %p105, %p106
      %p108 = scmp.ne.s32.totalorder %s97, %s98
      %p109 = scmp.eq.s32.totalorder %s21, 0
      %p110 = por %p108, %p109
      %p111 = scmp.ne.s32.totalorder %s97, %s98
      %p112 = scmp.eq.s32.totalorder %s22, 1
      %p113 = por %p111, %p112
      %p115 = scmp.ne.s32.totalorder %s98, %s114
      %p116 = scmp.eq.s32.totalorder %s22, 0
      %p117 = por %p115, %p116
      %p118 = scmp.le.s32.totalorder 1, %s16
      %p119 = scmp.lt.s32.totalorder %s16, 3
      %p120 = pnand %p118, %p119
      %p121 = pneg %p120
      // Predicated region
      $region9: #{tpu_custom_call.1} parent=5 // pred_check
        _
      $region10: #{tpu_custom_call.1} parent=5 // pred_check_branch
        %123 = sbr.rel (%p120) target = $region12
      $region11: #{tpu_custom_call.1} parent=5 // pred_region
        %s124 = ssub.s32 %s16, 1
        // Predicated region
        $region13: #{tpu_custom_call.1} parent=11 // pred_check
          %p125 = pneg %p63
        $region14: #{tpu_custom_call.1} parent=11 // pred_check_branch
          %127 = sbr.rel (%p125) target = $region16
        $region15: #{tpu_custom_call.1} parent=11 // pred_region
          %s129 = ssub.s32 320, 320
          %130 = vsyncadd [#allocation6], %s129
          %s131 = sshll.u32 [#allocation5], 4
          %s132 = int_to_ptr.vmem [resolvable:$true] %s131
          %137 = dma.hbm_to_vmem [thread:$0]  %s1, 320, %s132, [#allocation6], 64, 64, 4
        $region16: #{tpu_custom_call.1} parent=11 // pred_fallthru
          _
        // Predicated region
        $region17: #{tpu_custom_call.1} parent=11 // pred_check
          %p138 = pneg %p84
        $region18: #{tpu_custom_call.1} parent=11 // pred_check_branch
          %140 = sbr.rel (%p138) target = $region20
        $region19: #{tpu_custom_call.1} parent=11 // pred_region
          %s142 = ssub.s32 16, 16
          %143 = vsyncadd [#allocation6], %s142
          %s145 = sshll.u32 [#allocation7], 4
          %s146 = int_to_ptr.vmem [resolvable:$true] %s145
          %148 = dma.hbm_to_vmem [thread:$0]  %s2, 16, %s146, [#allocation6]
        $region20: #{tpu_custom_call.1} parent=11 // pred_fallthru
          _
      $region12: #{tpu_custom_call.1} parent=5 // pred_fallthru
        _
      %p149 = scmp.lt.s32.totalorder %s16, 2
      // Predicated region
      $region21: #{tpu_custom_call.1} parent=5 // pred_check
        %p150 = pneg %p149
      $region22: #{tpu_custom_call.1} parent=5 // pred_check_branch
        %152 = sbr.rel (%p150) target = $region24
      $region23: #{tpu_custom_call.1} parent=5 // pred_region
        // Predicated region
        $region25: #{tpu_custom_call.1} parent=23 // pred_check
          %p153 = pneg %p36
        $region26: #{tpu_custom_call.1} parent=23 // pred_check_branch
          %155 = sbr.rel (%p153) target = $region28
        $region27: #{tpu_custom_call.1} parent=23 // pred_region
          %s156 = sand.u32 %s26, 1
          %s157 = scalar_lea.sflag [#allocation3], %s156
          %s158 = sand.u32 %s26, 1
          %s159 = smul.addr %s158, 216
          %s160 = scalar_lea.vmem [#allocation2], %s159
          %s162 = ssub.s32 3456, 3456
          %163 = vsyncadd %s157, %s162
          %s164 = smul.addr %s16, 54
          %s165 = smul.addr %s164, 64
          %s166 = scalar_lea.hbm %s0, %s165
          %s167 = sshll.u32 %s160, 4
          %s168 = int_to_ptr.vmem [resolvable:$true] %s167
          %173 = dma.hbm_to_vmem [thread:$0]  %s166, 3456, %s168, %s157, 64, 64, 4
        $region28: #{tpu_custom_call.1} parent=23 // pred_fallthru
          _
      $region24: #{tpu_custom_call.1} parent=5 // pred_fallthru
        _
      %p174 = scmp.le.s32.totalorder 1, %s16
      %p175 = scmp.lt.s32.totalorder %s16, 3
      %p176 = pnand %p174, %p175
      %p177 = pneg %p176
      // Predicated region
      $region29: #{tpu_custom_call.1} parent=5 // pred_check
        _
      $region30: #{tpu_custom_call.1} parent=5 // pred_check_branch
        %179 = sbr.rel (%p176) target = $region32
      $region31: #{tpu_custom_call.1} parent=5 // pred_region
        %s180 = ssub.s32 %s16, 1
        %s181 = sand.u32 %s29, 1
        %s182 = scalar_lea.sflag [#allocation3], %s181
        %s183 = sand.u32 %s29, 1
        %s184 = smul.addr %s183, 216
        %s185 = scalar_lea.vmem [#allocation2], %s184
        // Predicated region
        $region33: #{tpu_custom_call.1} parent=31 // pred_check
          %p186 = pneg %p42
        $region34: #{tpu_custom_call.1} parent=31 // pred_check_branch
          %188 = sbr.rel (%p186) target = $region36
        $region35: #{tpu_custom_call.1} parent=31 // pred_region
          %189 = dma.done %s182, 3456
        $region36: #{tpu_custom_call.1} parent=31 // pred_fallthru
          _
        // Predicated region
        $region37: #{tpu_custom_call.1} parent=31 // pred_check
          %p190 = pneg %p63
        $region38: #{tpu_custom_call.1} parent=31 // pred_check_branch
          %192 = sbr.rel (%p190) target = $region40
        $region39: #{tpu_custom_call.1} parent=31 // pred_region
          %193 = dma.done [#allocation6], 320
        $region40: #{tpu_custom_call.1} parent=31 // pred_fallthru
          _
        // Predicated region
        $region41: #{tpu_custom_call.1} parent=31 // pred_check
          %p194 = pneg %p84
        $region42: #{tpu_custom_call.1} parent=31 // pred_check_branch
          %196 = sbr.rel (%p194) target = $region44
        $region43: #{tpu_custom_call.1} parent=31 // pred_region
          %197 = dma.done [#allocation6], 16
        $region44: #{tpu_custom_call.1} parent=31 // pred_fallthru
          _
        %s198 = sand.u32 %s29, 1
        %s199 = scalar_lea.sflag [#allocation3], %s198
        %s200 = sand.u32 %s29, 1
        %s201 = smul.addr %s200, 216
        %s202 = scalar_lea.vmem [#allocation2], %s201
        %p203 = pneg %p42
        %p204 = pneg %p39
        %p205 = pneg %p63
        %p206 = pneg %p60
        %p207 = pneg %p84
        %p208 = pneg %p81
        %p209 = pneg %p110
        %p210 = pneg %p107
        %s211 = sand.u32 %s97, 1
        %s212 = scalar_lea.sflag [#allocation4], %s211
        %s213 = sand.u32 %s97, 1
        %s214 = smul.addr %s213, 256
        %s215 = scalar_lea.vmem [#allocation8], %s214
        %v217 = vld [vmem:[%s185] sm:$0xf]
        %v218 = vld [vmem:[%s185 + $0x4] sm:$0xf]
        %v219 = vld [vmem:[%s185 + $0xc] sm:$0xf]
        %v220 = vld [vmem:[%s185 + $0x10] sm:$0xf]
        %v221 = vld [vmem:[%s185 + $0x18] sm:$0xf]
        %v222 = vld [vmem:[%s185 + $0x1c] sm:$0xf]
        %v223 = vld [vmem:[%s185 + $0x24] sm:$0xf]
        %v224 = vld [vmem:[%s185 + $0x28] sm:$0xf]
        %v225 = vld [vmem:[%s185 + $0x30] sm:$0xf]
        %v226 = vld [vmem:[%s185 + $0x34] sm:$0xf]
        %v227 = vld [vmem:[%s185 + $0x3c] sm:$0xf]
        %v228 = vld [vmem:[%s185 + $0x40] sm:$0xf]
        %v229 = vld [vmem:[%s185 + $0x48] sm:$0xf]
        %v230 = vld [vmem:[%s185 + $0x4c] sm:$0xf]
        %v231 = vld [vmem:[%s185 + $0x54] sm:$0xf]
        %v232 = vld [vmem:[%s185 + $0x58] sm:$0xf]
        %v233 = vld [vmem:[%s185 + $0x60] sm:$0xf]
        %v234 = vld [vmem:[%s185 + $0x64] sm:$0xf]
        %v235 = vld [vmem:[%s185 + $0x6c] sm:$0xf]
        %v236 = vld [vmem:[%s185 + $0x70] sm:$0xf]
        %v237 = vld [vmem:[%s185 + $0x78] sm:$0xf]
        %v238 = vld [vmem:[%s185 + $0x7c] sm:$0xf]
        %v239 = vld [vmem:[%s185 + $0x84] sm:$0xf]
        %v240 = vld [vmem:[%s185 + $0x88] sm:$0xf]
        %v241 = vld [vmem:[%s185 + $0x90] sm:$0xf]
        %v242 = vld [vmem:[%s185 + $0x94] sm:$0xf]
        %v243 = vld [vmem:[%s185 + $0x9c] sm:$0xf]
        %v244 = vld [vmem:[%s185 + $0xa0] sm:$0xf]
        %v245 = vld [vmem:[%s185 + $0xa8] sm:$0xf]
        %v246 = vld [vmem:[%s185 + $0xac] sm:$0xf]
        %v247 = vld [vmem:[%s185 + $0xb4] sm:$0xf]
        %v248 = vld [vmem:[%s185 + $0xb8] sm:$0xf]
        %v249 = vld [vmem:[%s185 + $0x8] sm:$0x1]
        %v250 = vld [vmem:[%s185 + $0x14] sm:$0x1]
        %v251 = vld [vmem:[%s185 + $0x20] sm:$0x1]
        %v252 = vld [vmem:[%s185 + $0x2c] sm:$0x1]
        %v253 = vld [vmem:[%s185 + $0x38] sm:$0x1]
        %v254 = vld [vmem:[%s185 + $0x44] sm:$0x1]
        %v255 = vld [vmem:[%s185 + $0x50] sm:$0x1]
        %v256 = vld [vmem:[%s185 + $0x5c] sm:$0x1]
        %v257 = vld [vmem:[%s185 + $0x68] sm:$0x1]
        %v258 = vld [vmem:[%s185 + $0x74] sm:$0x1]
        %v259 = vld [vmem:[%s185 + $0x80] sm:$0x1]
        %v260 = vld [vmem:[%s185 + $0x8c] sm:$0x1]
        %v261 = vld [vmem:[%s185 + $0x98] sm:$0x1]
        %v262 = vld [vmem:[%s185 + $0xa4] sm:$0x1]
        %v263 = vld [vmem:[%s185 + $0xb0] sm:$0x1]
        %v264 = vld [vmem:[%s185 + $0xbc] sm:$0x1]
        %v265 = vld [vmem:[%s185] sm:$0xe]
        %v266 = vld [vmem:[%s185 + $0xc] sm:$0xe]
        %v267 = vld [vmem:[%s185 + $0x18] sm:$0xe]
        %v268 = vld [vmem:[%s185 + $0x24] sm:$0xe]
        %v269 = vld [vmem:[%s185 + $0x30] sm:$0xe]
        %v270 = vld [vmem:[%s185 + $0x3c] sm:$0xe]
        %v271 = vld [vmem:[%s185 + $0x48] sm:$0xe]
        %v272 = vld [vmem:[%s185 + $0x54] sm:$0xe]
        %v273 = vld [vmem:[%s185 + $0x60] sm:$0xe]
        %v274 = vld [vmem:[%s185 + $0x6c] sm:$0xe]
        %v275 = vld [vmem:[%s185 + $0x78] sm:$0xe]
        %v276 = vld [vmem:[%s185 + $0x84] sm:$0xe]
        %v277 = vld [vmem:[%s185 + $0x90] sm:$0xe]
        %v278 = vld [vmem:[%s185 + $0x9c] sm:$0xe]
        %v279 = vld [vmem:[%s185 + $0xa8] sm:$0xe]
        %v280 = vld [vmem:[%s185 + $0xb4] sm:$0xe]
        %s281 = scalar_lea.vmem %s185, 12 [#allocation2]
        %v282 = vld [vmem:[%s281] sm:$0xf]
        %v283 = vld [vmem:[%s281 + $0x4] sm:$0xf]
        %v284 = vld [vmem:[%s281 + $0xc] sm:$0xf]
        %v285 = vld [vmem:[%s281 + $0x10] sm:$0xf]
        %v286 = vld [vmem:[%s281 + $0x18] sm:$0xf]
        %v287 = vld [vmem:[%s281 + $0x1c] sm:$0xf]
        %v288 = vld [vmem:[%s281 + $0x24] sm:$0xf]
        %v289 = vld [vmem:[%s281 + $0x28] sm:$0xf]
        %v290 = vld [vmem:[%s281 + $0x30] sm:$0xf]
        %v291 = vld [vmem:[%s281 + $0x34] sm:$0xf]
        %v292 = vld [vmem:[%s281 + $0x3c] sm:$0xf]
        %v293 = vld [vmem:[%s281 + $0x40] sm:$0xf]
        %v294 = vld [vmem:[%s281 + $0x48] sm:$0xf]
        %v295 = vld [vmem:[%s281 + $0x4c] sm:$0xf]
        %v296 = vld [vmem:[%s281 + $0x54] sm:$0xf]
        %v297 = vld [vmem:[%s281 + $0x58] sm:$0xf]
        %v298 = vld [vmem:[%s281 + $0x60] sm:$0xf]
        %v299 = vld [vmem:[%s281 + $0x64] sm:$0xf]
        %v300 = vld [vmem:[%s281 + $0x6c] sm:$0xf]
        %v301 = vld [vmem:[%s281 + $0x70] sm:$0xf]
        %v302 = vld [vmem:[%s281 + $0x78] sm:$0xf]
        %v303 = vld [vmem:[%s281 + $0x7c] sm:$0xf]
        %v304 = vld [vmem:[%s281 + $0x84] sm:$0xf]
        %v305 = vld [vmem:[%s281 + $0x88] sm:$0xf]
        %v306 = vld [vmem:[%s281 + $0x90] sm:$0xf]
        %v307 = vld [vmem:[%s281 + $0x94] sm:$0xf]
        %v308 = vld [vmem:[%s281 + $0x9c] sm:$0xf]
        %v309 = vld [vmem:[%s281 + $0xa0] sm:$0xf]
        %v310 = vld [vmem:[%s281 + $0xa8] sm:$0xf]
        %v311 = vld [vmem:[%s281 + $0xac] sm:$0xf]
        %v312 = vld [vmem:[%s281 + $0xb4] sm:$0xf]
        %v313 = vld [vmem:[%s281 + $0xb8] sm:$0xf]
        %v314 = vld [vmem:[%s281 + $0x8] sm:$0x1]
        %v315 = vld [vmem:[%s281 + $0x14] sm:$0x1]
        %v316 = vld [vmem:[%s281 + $0x20] sm:$0x1]
        %v317 = vld [vmem:[%s281 + $0x2c] sm:$0x1]
        %v318 = vld [vmem:[%s281 + $0x38] sm:$0x1]
        %v319 = vld [vmem:[%s281 + $0x44] sm:$0x1]
        %v320 = vld [vmem:[%s281 + $0x50] sm:$0x1]
        %v321 = vld [vmem:[%s281 + $0x5c] sm:$0x1]
        %v322 = vld [vmem:[%s281 + $0x68] sm:$0x1]
        %v323 = vld [vmem:[%s281 + $0x74] sm:$0x1]
        %v324 = vld [vmem:[%s281 + $0x80] sm:$0x1]
        %v325 = vld [vmem:[%s281 + $0x8c] sm:$0x1]
        %v326 = vld [vmem:[%s281 + $0x98] sm:$0x1]
        %v327 = vld [vmem:[%s281 + $0xa4] sm:$0x1]
        %v328 = vld [vmem:[%s281 + $0xb0] sm:$0x1]
        %v329 = vld [vmem:[%s281 + $0xbc] sm:$0x1]
        %v330 = vld [vmem:[%s281] sm:$0xe]
        %v331 = vld [vmem:[%s281 + $0xc] sm:$0xe]
        %v332 = vld [vmem:[%s281 + $0x18] sm:$0xe]
        %v333 = vld [vmem:[%s281 + $0x24] sm:$0xe]
        %v334 = vld [vmem:[%s281 + $0x30] sm:$0xe]
        %v335 = vld [vmem:[%s281 + $0x3c] sm:$0xe]
        %v336 = vld [vmem:[%s281 + $0x48] sm:$0xe]
        %v337 = vld [vmem:[%s281 + $0x54] sm:$0xe]
        %v338 = vld [vmem:[%s281 + $0x60] sm:$0xe]
        %v339 = vld [vmem:[%s281 + $0x6c] sm:$0xe]
        %v340 = vld [vmem:[%s281 + $0x78] sm:$0xe]
        %v341 = vld [vmem:[%s281 + $0x84] sm:$0xe]
        %v342 = vld [vmem:[%s281 + $0x90] sm:$0xe]
        %v343 = vld [vmem:[%s281 + $0x9c] sm:$0xe]
        %v344 = vld [vmem:[%s281 + $0xa8] sm:$0xe]
        %v345 = vld [vmem:[%s281 + $0xb4] sm:$0xe]
        %s346 = scalar_lea.vmem %s185, 24 [#allocation2]
        %v347 = vld [vmem:[%s346] sm:$0xf]
        %v348 = vld [vmem:[%s346 + $0x4] sm:$0xf]
        %v349 = vld [vmem:[%s346 + $0xc] sm:$0xf]
        %v350 = vld [vmem:[%s346 + $0x10] sm:$0xf]
        %v351 = vld [vmem:[%s346 + $0x18] sm:$0xf]
        %v352 = vld [vmem:[%s346 + $0x1c] sm:$0xf]
        %v353 = vld [vmem:[%s346 + $0x24] sm:$0xf]
        %v354 = vld [vmem:[%s346 + $0x28] sm:$0xf]
        %v355 = vld [vmem:[%s346 + $0x30] sm:$0xf]
        %v356 = vld [vmem:[%s346 + $0x34] sm:$0xf]
        %v357 = vld [vmem:[%s346 + $0x3c] sm:$0xf]
        %v358 = vld [vmem:[%s346 + $0x40] sm:$0xf]
        %v359 = vld [vmem:[%s346 + $0x48] sm:$0xf]
        %v360 = vld [vmem:[%s346 + $0x4c] sm:$0xf]
        %v361 = vld [vmem:[%s346 + $0x54] sm:$0xf]
        %v362 = vld [vmem:[%s346 + $0x58] sm:$0xf]
        %v363 = vld [vmem:[%s346 + $0x60] sm:$0xf]
        %v364 = vld [vmem:[%s346 + $0x64] sm:$0xf]
        %v365 = vld [vmem:[%s346 + $0x6c] sm:$0xf]
        %v366 = vld [vmem:[%s346 + $0x70] sm:$0xf]
        %v367 = vld [vmem:[%s346 + $0x78] sm:$0xf]
        %v368 = vld [vmem:[%s346 + $0x7c] sm:$0xf]
        %v369 = vld [vmem:[%s346 + $0x84] sm:$0xf]
        %v370 = vld [vmem:[%s346 + $0x88] sm:$0xf]
        %v371 = vld [vmem:[%s346 + $0x90] sm:$0xf]
        %v372 = vld [vmem:[%s346 + $0x94] sm:$0xf]
        %v373 = vld [vmem:[%s346 + $0x9c] sm:$0xf]
        %v374 = vld [vmem:[%s346 + $0xa0] sm:$0xf]
        %v375 = vld [vmem:[%s346 + $0xa8] sm:$0xf]
        %v376 = vld [vmem:[%s346 + $0xac] sm:$0xf]
        %v377 = vld [vmem:[%s346 + $0xb4] sm:$0xf]
        %v378 = vld [vmem:[%s346 + $0xb8] sm:$0xf]
        %v379 = vld [vmem:[%s346 + $0x8] sm:$0x1]
        %v380 = vld [vmem:[%s346 + $0x14] sm:$0x1]
        %v381 = vld [vmem:[%s346 + $0x20] sm:$0x1]
        %v382 = vld [vmem:[%s346 + $0x2c] sm:$0x1]
        %v383 = vld [vmem:[%s346 + $0x38] sm:$0x1]
        %v384 = vld [vmem:[%s346 + $0x44] sm:$0x1]
        %v385 = vld [vmem:[%s346 + $0x50] sm:$0x1]
        %v386 = vld [vmem:[%s346 + $0x5c] sm:$0x1]
        %v387 = vld [vmem:[%s346 + $0x68] sm:$0x1]
        %v388 = vld [vmem:[%s346 + $0x74] sm:$0x1]
        %v389 = vld [vmem:[%s346 + $0x80] sm:$0x1]
        %v390 = vld [vmem:[%s346 + $0x8c] sm:$0x1]
        %v391 = vld [vmem:[%s346 + $0x98] sm:$0x1]
        %v392 = vld [vmem:[%s346 + $0xa4] sm:$0x1]
        %v393 = vld [vmem:[%s346 + $0xb0] sm:$0x1]
        %v394 = vld [vmem:[%s346 + $0xbc] sm:$0x1]
        %v395 = vld [vmem:[%s346] sm:$0xe]
        %v396 = vld [vmem:[%s346 + $0xc] sm:$0xe]
        %v397 = vld [vmem:[%s346 + $0x18] sm:$0xe]
        %v398 = vld [vmem:[%s346 + $0x24] sm:$0xe]
        %v399 = vld [vmem:[%s346 + $0x30] sm:$0xe]
        %v400 = vld [vmem:[%s346 + $0x3c] sm:$0xe]
        %v401 = vld [vmem:[%s346 + $0x48] sm:$0xe]
        %v402 = vld [vmem:[%s346 + $0x54] sm:$0xe]
        %v403 = vld [vmem:[%s346 + $0x60] sm:$0xe]
        %v404 = vld [vmem:[%s346 + $0x6c] sm:$0xe]
        %v405 = vld [vmem:[%s346 + $0x78] sm:$0xe]
        %v406 = vld [vmem:[%s346 + $0x84] sm:$0xe]
        %v407 = vld [vmem:[%s346 + $0x90] sm:$0xe]
        %v408 = vld [vmem:[%s346 + $0x9c] sm:$0xe]
        %v409 = vld [vmem:[%s346 + $0xa8] sm:$0xe]
        %v410 = vld [vmem:[%s346 + $0xb4] sm:$0xe]
        %v443 = vunpack.c.l.b16 %v217
        %v444 = vunpack.c.l.b16 %v218
        %v445 = vunpack.c.l.b16 %v219
        %v446 = vunpack.c.l.b16 %v220
        %v447 = vunpack.c.l.b16 %v221
        %v448 = vunpack.c.l.b16 %v222
        %v449 = vunpack.c.l.b16 %v223
        %v450 = vunpack.c.l.b16 %v224
        %v451 = vunpack.c.l.b16 %v225
        %v452 = vunpack.c.l.b16 %v226
        %v453 = vunpack.c.l.b16 %v227
        %v454 = vunpack.c.l.b16 %v228
        %v455 = vunpack.c.l.b16 %v229
        %v456 = vunpack.c.l.b16 %v230
        %v457 = vunpack.c.l.b16 %v231
        %v458 = vunpack.c.l.b16 %v232
        %v459 = vunpack.c.l.b16 %v233
        %v460 = vunpack.c.l.b16 %v234
        %v461 = vunpack.c.l.b16 %v235
        %v462 = vunpack.c.l.b16 %v236
        %v463 = vunpack.c.l.b16 %v237
        %v464 = vunpack.c.l.b16 %v238
        %v465 = vunpack.c.l.b16 %v239
        %v466 = vunpack.c.l.b16 %v240
        %v467 = vunpack.c.l.b16 %v241
        %v468 = vunpack.c.l.b16 %v242
        %v469 = vunpack.c.l.b16 %v243
        %v470 = vunpack.c.l.b16 %v244
        %v471 = vunpack.c.l.b16 %v245
        %v472 = vunpack.c.l.b16 %v246
        %v473 = vunpack.c.l.b16 %v247
        %v474 = vunpack.c.l.b16 %v248
        %v475 = vpack.c.b16 %v444, %v443
        %v476 = vpack.c.b16 %v446, %v445
        %v477 = vpack.c.b16 %v448, %v447
        %v478 = vpack.c.b16 %v450, %v449
        %v479 = vpack.c.b16 %v452, %v451
        %v480 = vpack.c.b16 %v454, %v453
        %v481 = vpack.c.b16 %v456, %v455
        %v482 = vpack.c.b16 %v458, %v457
        %v483 = vpack.c.b16 %v460, %v459
        %v484 = vpack.c.b16 %v462, %v461
        %v485 = vpack.c.b16 %v464, %v463
        %v486 = vpack.c.b16 %v466, %v465
        %v487 = vpack.c.b16 %v468, %v467
        %v488 = vpack.c.b16 %v470, %v469
        %v489 = vpack.c.b16 %v472, %v471
        %v490 = vpack.c.b16 %v474, %v473
        %v507 = vunpack.c.l.b16 %v249
        %v508 = vunpack.c.l.b16 %v250
        %v509 = vunpack.c.l.b16 %v251
        %v510 = vunpack.c.l.b16 %v252
        %v511 = vunpack.c.l.b16 %v253
        %v512 = vunpack.c.l.b16 %v254
        %v513 = vunpack.c.l.b16 %v255
        %v514 = vunpack.c.l.b16 %v256
        %v515 = vunpack.c.l.b16 %v257
        %v516 = vunpack.c.l.b16 %v258
        %v517 = vunpack.c.l.b16 %v259
        %v518 = vunpack.c.l.b16 %v260
        %v519 = vunpack.c.l.b16 %v261
        %v520 = vunpack.c.l.b16 %v262
        %v521 = vunpack.c.l.b16 %v263
        %v522 = vunpack.c.l.b16 %v264
        %v523 = vpack.c.b16 %v507, %v507
        %v524 = vpack.c.b16 %v508, %v508
        %v525 = vpack.c.b16 %v509, %v509
        %v526 = vpack.c.b16 %v510, %v510
        %v527 = vpack.c.b16 %v511, %v511
        %v528 = vpack.c.b16 %v512, %v512
        %v529 = vpack.c.b16 %v513, %v513
        %v530 = vpack.c.b16 %v514, %v514
        %v531 = vpack.c.b16 %v515, %v515
        %v532 = vpack.c.b16 %v516, %v516
        %v533 = vpack.c.b16 %v517, %v517
        %v534 = vpack.c.b16 %v518, %v518
        %v535 = vpack.c.b16 %v519, %v519
        %v536 = vpack.c.b16 %v520, %v520
        %v537 = vpack.c.b16 %v521, %v521
        %v538 = vpack.c.b16 %v522, %v522
        %vm539 = vsmask.f32 7424
        %v541 = vshrl.u32 %v475, 16
        %v543 = vshll.u32 %v475, 16
        %v545 = vrot.slane %v543, 1
        %v546 = vor.u32 %v541, %v545
        %v548 = vshll.u32 %v523, 16
        %v550 = vrot.slane %v548, 1
        %v551 = vsel %vm539, %v546, %v550
        %v553 = vshrl.u32 %v476, 16
        %v555 = vshll.u32 %v476, 16
        %v557 = vrot.slane %v555, 1
        %v558 = vor.u32 %v553, %v557
        %v560 = vshll.u32 %v524, 16
        %v562 = vrot.slane %v560, 1
        %v563 = vsel %vm539, %v558, %v562
        %v565 = vshrl.u32 %v477, 16
        %v567 = vshll.u32 %v477, 16
        %v569 = vrot.slane %v567, 1
        %v570 = vor.u32 %v565, %v569
        %v572 = vshll.u32 %v525, 16
        %v574 = vrot.slane %v572, 1
        %v575 = vsel %vm539, %v570, %v574
        %v577 = vshrl.u32 %v478, 16
        %v579 = vshll.u32 %v478, 16
        %v581 = vrot.slane %v579, 1
        %v582 = vor.u32 %v577, %v581
        %v584 = vshll.u32 %v526, 16
        %v586 = vrot.slane %v584, 1
        %v587 = vsel %vm539, %v582, %v586
        %v589 = vshrl.u32 %v479, 16
        %v591 = vshll.u32 %v479, 16
        %v593 = vrot.slane %v591, 1
        %v594 = vor.u32 %v589, %v593
        %v596 = vshll.u32 %v527, 16
        %v598 = vrot.slane %v596, 1
        %v599 = vsel %vm539, %v594, %v598
        %v601 = vshrl.u32 %v480, 16
        %v603 = vshll.u32 %v480, 16
        %v605 = vrot.slane %v603, 1
        %v606 = vor.u32 %v601, %v605
        %v608 = vshll.u32 %v528, 16
        %v610 = vrot.slane %v608, 1
        %v611 = vsel %vm539, %v606, %v610
        %v613 = vshrl.u32 %v481, 16
        %v615 = vshll.u32 %v481, 16
        %v617 = vrot.slane %v615, 1
        %v618 = vor.u32 %v613, %v617
        %v620 = vshll.u32 %v529, 16
        %v622 = vrot.slane %v620, 1
        %v623 = vsel %vm539, %v618, %v622
        %v625 = vshrl.u32 %v482, 16
        %v627 = vshll.u32 %v482, 16
        %v629 = vrot.slane %v627, 1
        %v630 = vor.u32 %v625, %v629
        %v632 = vshll.u32 %v530, 16
        %v634 = vrot.slane %v632, 1
        %v635 = vsel %vm539, %v630, %v634
        %v637 = vshrl.u32 %v483, 16
        %v639 = vshll.u32 %v483, 16
        %v641 = vrot.slane %v639, 1
        %v642 = vor.u32 %v637, %v641
        %v644 = vshll.u32 %v531, 16
        %v646 = vrot.slane %v644, 1
        %v647 = vsel %vm539, %v642, %v646
        %v649 = vshrl.u32 %v484, 16
        %v651 = vshll.u32 %v484, 16
        %v653 = vrot.slane %v651, 1
        %v654 = vor.u32 %v649, %v653
        %v656 = vshll.u32 %v532, 16
        %v658 = vrot.slane %v656, 1
        %v659 = vsel %vm539, %v654, %v658
        %v661 = vshrl.u32 %v485, 16
        %v663 = vshll.u32 %v485, 16
        %v665 = vrot.slane %v663, 1
        %v666 = vor.u32 %v661, %v665
        %v668 = vshll.u32 %v533, 16
        %v670 = vrot.slane %v668, 1
        %v671 = vsel %vm539, %v666, %v670
        %v673 = vshrl.u32 %v486, 16
        %v675 = vshll.u32 %v486, 16
        %v677 = vrot.slane %v675, 1
        %v678 = vor.u32 %v673, %v677
        %v680 = vshll.u32 %v534, 16
        %v682 = vrot.slane %v680, 1
        %v683 = vsel %vm539, %v678, %v682
        %v685 = vshrl.u32 %v487, 16
        %v687 = vshll.u32 %v487, 16
        %v689 = vrot.slane %v687, 1
        %v690 = vor.u32 %v685, %v689
        %v692 = vshll.u32 %v535, 16
        %v694 = vrot.slane %v692, 1
        %v695 = vsel %vm539, %v690, %v694
        %v697 = vshrl.u32 %v488, 16
        %v699 = vshll.u32 %v488, 16
        %v701 = vrot.slane %v699, 1
        %v702 = vor.u32 %v697, %v701
        %v704 = vshll.u32 %v536, 16
        %v706 = vrot.slane %v704, 1
        %v707 = vsel %vm539, %v702, %v706
        %v709 = vshrl.u32 %v489, 16
        %v711 = vshll.u32 %v489, 16
        %v713 = vrot.slane %v711, 1
        %v714 = vor.u32 %v709, %v713
        %v716 = vshll.u32 %v537, 16
        %v718 = vrot.slane %v716, 1
        %v719 = vsel %vm539, %v714, %v718
        %v721 = vshrl.u32 %v490, 16
        %v723 = vshll.u32 %v490, 16
        %v725 = vrot.slane %v723, 1
        %v726 = vor.u32 %v721, %v725
        %v728 = vshll.u32 %v538, 16
        %v730 = vrot.slane %v728, 1
        %v731 = vsel %vm539, %v726, %v730
        %732 = vrot.lane.b32.xlu0 %v551, 4
        %v733 = vpop.permute.xlu0 %732
        %734 = vrot.lane.b32.xlu0 %v563, 4
        %v735 = vpop.permute.xlu0 %734
        %736 = vrot.lane.b32.xlu0 %v575, 4
        %v737 = vpop.permute.xlu0 %736
        %738 = vrot.lane.b32.xlu0 %v587, 4
        %v739 = vpop.permute.xlu0 %738
        %740 = vrot.lane.b32.xlu0 %v599, 4
        %v741 = vpop.permute.xlu0 %740
        %742 = vrot.lane.b32.xlu0 %v611, 4
        %v743 = vpop.permute.xlu0 %742
        %744 = vrot.lane.b32.xlu0 %v623, 4
        %v745 = vpop.permute.xlu0 %744
        %746 = vrot.lane.b32.xlu0 %v635, 4
        %v747 = vpop.permute.xlu0 %746
        %748 = vrot.lane.b32.xlu0 %v647, 4
        %v749 = vpop.permute.xlu0 %748
        %750 = vrot.lane.b32.xlu0 %v659, 4
        %v751 = vpop.permute.xlu0 %750
        %752 = vrot.lane.b32.xlu0 %v671, 4
        %v753 = vpop.permute.xlu0 %752
        %754 = vrot.lane.b32.xlu0 %v683, 4
        %v755 = vpop.permute.xlu0 %754
        %756 = vrot.lane.b32.xlu0 %v695, 4
        %v757 = vpop.permute.xlu0 %756
        %758 = vrot.lane.b32.xlu0 %v707, 4
        %v759 = vpop.permute.xlu0 %758
        %760 = vrot.lane.b32.xlu0 %v719, 4
        %v761 = vpop.permute.xlu0 %760
        %762 = vrot.lane.b32.xlu0 %v731, 4
        %v763 = vpop.permute.xlu0 %762
        %v780 = vunpack.c.l.b16 %v265
        %v781 = vunpack.c.l.b16 %v266
        %v782 = vunpack.c.l.b16 %v267
        %v783 = vunpack.c.l.b16 %v268
        %v784 = vunpack.c.l.b16 %v269
        %v785 = vunpack.c.l.b16 %v270
        %v786 = vunpack.c.l.b16 %v271
        %v787 = vunpack.c.l.b16 %v272
        %v788 = vunpack.c.l.b16 %v273
        %v789 = vunpack.c.l.b16 %v274
        %v790 = vunpack.c.l.b16 %v275
        %v791 = vunpack.c.l.b16 %v276
        %v792 = vunpack.c.l.b16 %v277
        %v793 = vunpack.c.l.b16 %v278
        %v794 = vunpack.c.l.b16 %v279
        %v795 = vunpack.c.l.b16 %v280
        %v796 = vpack.c.b16 %v444, %v780
        %v797 = vpack.c.b16 %v446, %v781
        %v798 = vpack.c.b16 %v448, %v782
        %v799 = vpack.c.b16 %v450, %v783
        %v800 = vpack.c.b16 %v452, %v784
        %v801 = vpack.c.b16 %v454, %v785
        %v802 = vpack.c.b16 %v456, %v786
        %v803 = vpack.c.b16 %v458, %v787
        %v804 = vpack.c.b16 %v460, %v788
        %v805 = vpack.c.b16 %v462, %v789
        %v806 = vpack.c.b16 %v464, %v790
        %v807 = vpack.c.b16 %v466, %v791
        %v808 = vpack.c.b16 %v468, %v792
        %v809 = vpack.c.b16 %v470, %v793
        %v810 = vpack.c.b16 %v472, %v794
        %v811 = vpack.c.b16 %v474, %v795
        %vm812 = vcmask 1046528
        %v813 = vrot.slane %v796, 1
        %v814 = vrot.slane %v523, 1
        %v815 = vsel %vm812, %v813, %v814
        %v816 = vrot.slane %v797, 1
        %v817 = vrot.slane %v524, 1
        %v818 = vsel %vm812, %v816, %v817
        %v819 = vrot.slane %v798, 1
        %v820 = vrot.slane %v525, 1
        %v821 = vsel %vm812, %v819, %v820
        %v822 = vrot.slane %v799, 1
        %v823 = vrot.slane %v526, 1
        %v824 = vsel %vm812, %v822, %v823
        %v825 = vrot.slane %v800, 1
        %v826 = vrot.slane %v527, 1
        %v827 = vsel %vm812, %v825, %v826
        %v828 = vrot.slane %v801, 1
        %v829 = vrot.slane %v528, 1
        %v830 = vsel %vm812, %v828, %v829
        %v831 = vrot.slane %v802, 1
        %v832 = vrot.slane %v529, 1
        %v833 = vsel %vm812, %v831, %v832
        %v834 = vrot.slane %v803, 1
        %v835 = vrot.slane %v530, 1
        %v836 = vsel %vm812, %v834, %v835
        %v837 = vrot.slane %v804, 1
        %v838 = vrot.slane %v531, 1
        %v839 = vsel %vm812, %v837, %v838
        %v840 = vrot.slane %v805, 1
        %v841 = vrot.slane %v532, 1
        %v842 = vsel %vm812, %v840, %v841
        %v843 = vrot.slane %v806, 1
        %v844 = vrot.slane %v533, 1
        %v845 = vsel %vm812, %v843, %v844
        %v846 = vrot.slane %v807, 1
        %v847 = vrot.slane %v534, 1
        %v848 = vsel %vm812, %v846, %v847
        %v849 = vrot.slane %v808, 1
        %v850 = vrot.slane %v535, 1
        %v851 = vsel %vm812, %v849, %v850
        %v852 = vrot.slane %v809, 1
        %v853 = vrot.slane %v536, 1
        %v854 = vsel %vm812, %v852, %v853
        %v855 = vrot.slane %v810, 1
        %v856 = vrot.slane %v537, 1
        %v857 = vsel %vm812, %v855, %v856
        %v858 = vrot.slane %v811, 1
        %v859 = vrot.slane %v538, 1
        %v860 = vsel %vm812, %v858, %v859
        %861 = vrot.lane.b32.xlu0 %v815, 8
        %v862 = vpop.permute.xlu0 %861
        %863 = vrot.lane.b32.xlu0 %v818, 8
        %v864 = vpop.permute.xlu0 %863
        %865 = vrot.lane.b32.xlu0 %v821, 8
        %v866 = vpop.permute.xlu0 %865
        %867 = vrot.lane.b32.xlu0 %v824, 8
        %v868 = vpop.permute.xlu0 %867
        %869 = vrot.lane.b32.xlu0 %v827, 8
        %v870 = vpop.permute.xlu0 %869
        %871 = vrot.lane.b32.xlu0 %v830, 8
        %v872 = vpop.permute.xlu0 %871
        %873 = vrot.lane.b32.xlu0 %v833, 8
        %v874 = vpop.permute.xlu0 %873
        %875 = vrot.lane.b32.xlu0 %v836, 8
        %v876 = vpop.permute.xlu0 %875
        %877 = vrot.lane.b32.xlu0 %v839, 8
        %v878 = vpop.permute.xlu0 %877
        %879 = vrot.lane.b32.xlu0 %v842, 8
        %v880 = vpop.permute.xlu0 %879
        %881 = vrot.lane.b32.xlu0 %v845, 8
        %v882 = vpop.permute.xlu0 %881
        %883 = vrot.lane.b32.xlu0 %v848, 8
        %v884 = vpop.permute.xlu0 %883
        %885 = vrot.lane.b32.xlu0 %v851, 8
        %v886 = vpop.permute.xlu0 %885
        %887 = vrot.lane.b32.xlu0 %v854, 8
        %v888 = vpop.permute.xlu0 %887
        %889 = vrot.lane.b32.xlu0 %v857, 8
        %v890 = vpop.permute.xlu0 %889
        %891 = vrot.lane.b32.xlu0 %v860, 8
        %v892 = vpop.permute.xlu0 %891
        %v925 = vunpack.c.l.b16 %v282
        %v926 = vunpack.c.l.b16 %v283
        %v927 = vunpack.c.l.b16 %v284
        %v928 = vunpack.c.l.b16 %v285
        %v929 = vunpack.c.l.b16 %v286
        %v930 = vunpack.c.l.b16 %v287
        %v931 = vunpack.c.l.b16 %v288
        %v932 = vunpack.c.l.b16 %v289
        %v933 = vunpack.c.l.b16 %v290
        %v934 = vunpack.c.l.b16 %v291
        %v935 = vunpack.c.l.b16 %v292
        %v936 = vunpack.c.l.b16 %v293
        %v937 = vunpack.c.l.b16 %v294
        %v938 = vunpack.c.l.b16 %v295
        %v939 = vunpack.c.l.b16 %v296
        %v940 = vunpack.c.l.b16 %v297
        %v941 = vunpack.c.l.b16 %v298
        %v942 = vunpack.c.l.b16 %v299
        %v943 = vunpack.c.l.b16 %v300
        %v944 = vunpack.c.l.b16 %v301
        %v945 = vunpack.c.l.b16 %v302
        %v946 = vunpack.c.l.b16 %v303
        %v947 = vunpack.c.l.b16 %v304
        %v948 = vunpack.c.l.b16 %v305
        %v949 = vunpack.c.l.b16 %v306
        %v950 = vunpack.c.l.b16 %v307
        %v951 = vunpack.c.l.b16 %v308
        %v952 = vunpack.c.l.b16 %v309
        %v953 = vunpack.c.l.b16 %v310
        %v954 = vunpack.c.l.b16 %v311
        %v955 = vunpack.c.l.b16 %v312
        %v956 = vunpack.c.l.b16 %v313
        %v957 = vpack.c.b16 %v926, %v925
        %v958 = vpack.c.b16 %v928, %v927
        %v959 = vpack.c.b16 %v930, %v929
        %v960 = vpack.c.b16 %v932, %v931
        %v961 = vpack.c.b16 %v934, %v933
        %v962 = vpack.c.b16 %v936, %v935
        %v963 = vpack.c.b16 %v938, %v937
        %v964 = vpack.c.b16 %v940, %v939
        %v965 = vpack.c.b16 %v942, %v941
        %v966 = vpack.c.b16 %v944, %v943
        %v967 = vpack.c.b16 %v946, %v945
        %v968 = vpack.c.b16 %v948, %v947
        %v969 = vpack.c.b16 %v950, %v949
        %v970 = vpack.c.b16 %v952, %v951
        %v971 = vpack.c.b16 %v954, %v953
        %v972 = vpack.c.b16 %v956, %v955
        %973 = vrot.lane.b32.xlu0 %v957, 12
        %v974 = vpop.permute.xlu0 %973
        %975 = vrot.lane.b32.xlu0 %v958, 12
        %v976 = vpop.permute.xlu0 %975
        %977 = vrot.lane.b32.xlu0 %v959, 12
        %v978 = vpop.permute.xlu0 %977
        %979 = vrot.lane.b32.xlu0 %v960, 12
        %v980 = vpop.permute.xlu0 %979
        %981 = vrot.lane.b32.xlu0 %v961, 12
        %v982 = vpop.permute.xlu0 %981
        %983 = vrot.lane.b32.xlu0 %v962, 12
        %v984 = vpop.permute.xlu0 %983
        %985 = vrot.lane.b32.xlu0 %v963, 12
        %v986 = vpop.permute.xlu0 %985
        %987 = vrot.lane.b32.xlu0 %v964, 12
        %v988 = vpop.permute.xlu0 %987
        %989 = vrot.lane.b32.xlu0 %v965, 12
        %v990 = vpop.permute.xlu0 %989
        %991 = vrot.lane.b32.xlu0 %v966, 12
        %v992 = vpop.permute.xlu0 %991
        %993 = vrot.lane.b32.xlu0 %v967, 12
        %v994 = vpop.permute.xlu0 %993
        %995 = vrot.lane.b32.xlu0 %v968, 12
        %v996 = vpop.permute.xlu0 %995
        %997 = vrot.lane.b32.xlu0 %v969, 12
        %v998 = vpop.permute.xlu0 %997
        %999 = vrot.lane.b32.xlu0 %v970, 12
        %v1000 = vpop.permute.xlu0 %999
        %1001 = vrot.lane.b32.xlu0 %v971, 12
        %v1002 = vpop.permute.xlu0 %1001
        %1003 = vrot.lane.b32.xlu0 %v972, 12
        %v1004 = vpop.permute.xlu0 %1003
        %v1021 = vunpack.c.l.b16 %v314
        %v1022 = vunpack.c.l.b16 %v315
        %v1023 = vunpack.c.l.b16 %v316
        %v1024 = vunpack.c.l.b16 %v317
        %v1025 = vunpack.c.l.b16 %v318
        %v1026 = vunpack.c.l.b16 %v319
        %v1027 = vunpack.c.l.b16 %v320
        %v1028 = vunpack.c.l.b16 %v321
        %v1029 = vunpack.c.l.b16 %v322
        %v1030 = vunpack.c.l.b16 %v323
        %v1031 = vunpack.c.l.b16 %v324
        %v1032 = vunpack.c.l.b16 %v325
        %v1033 = vunpack.c.l.b16 %v326
        %v1034 = vunpack.c.l.b16 %v327
        %v1035 = vunpack.c.l.b16 %v328
        %v1036 = vunpack.c.l.b16 %v329
        %v1037 = vpack.c.b16 %v1021, %v1021
        %v1038 = vpack.c.b16 %v1022, %v1022
        %v1039 = vpack.c.b16 %v1023, %v1023
        %v1040 = vpack.c.b16 %v1024, %v1024
        %v1041 = vpack.c.b16 %v1025, %v1025
        %v1042 = vpack.c.b16 %v1026, %v1026
        %v1043 = vpack.c.b16 %v1027, %v1027
        %v1044 = vpack.c.b16 %v1028, %v1028
        %v1045 = vpack.c.b16 %v1029, %v1029
        %v1046 = vpack.c.b16 %v1030, %v1030
        %v1047 = vpack.c.b16 %v1031, %v1031
        %v1048 = vpack.c.b16 %v1032, %v1032
        %v1049 = vpack.c.b16 %v1033, %v1033
        %v1050 = vpack.c.b16 %v1034, %v1034
        %v1051 = vpack.c.b16 %v1035, %v1035
        %v1052 = vpack.c.b16 %v1036, %v1036
        %v1054 = vshrl.u32 %v957, 16
        %v1056 = vshll.u32 %v957, 16
        %v1058 = vrot.slane %v1056, 1
        %v1059 = vor.u32 %v1054, %v1058
        %v1061 = vshll.u32 %v1037, 16
        %v1063 = vrot.slane %v1061, 1
        %v1064 = vsel %vm539, %v1059, %v1063
        %v1066 = vshrl.u32 %v958, 16
        %v1068 = vshll.u32 %v958, 16
        %v1070 = vrot.slane %v1068, 1
        %v1071 = vor.u32 %v1066, %v1070
        %v1073 = vshll.u32 %v1038, 16
        %v1075 = vrot.slane %v1073, 1
        %v1076 = vsel %vm539, %v1071, %v1075
        %v1078 = vshrl.u32 %v959, 16
        %v1080 = vshll.u32 %v959, 16
        %v1082 = vrot.slane %v1080, 1
        %v1083 = vor.u32 %v1078, %v1082
        %v1085 = vshll.u32 %v1039, 16
        %v1087 = vrot.slane %v1085, 1
        %v1088 = vsel %vm539, %v1083, %v1087
        %v1090 = vshrl.u32 %v960, 16
        %v1092 = vshll.u32 %v960, 16
        %v1094 = vrot.slane %v1092, 1
        %v1095 = vor.u32 %v1090, %v1094
        %v1097 = vshll.u32 %v1040, 16
        %v1099 = vrot.slane %v1097, 1
        %v1100 = vsel %vm539, %v1095, %v1099
        %v1102 = vshrl.u32 %v961, 16
        %v1104 = vshll.u32 %v961, 16
        %v1106 = vrot.slane %v1104, 1
        %v1107 = vor.u32 %v1102, %v1106
        %v1109 = vshll.u32 %v1041, 16
        %v1111 = vrot.slane %v1109, 1
        %v1112 = vsel %vm539, %v1107, %v1111
        %v1114 = vshrl.u32 %v962, 16
        %v1116 = vshll.u32 %v962, 16
        %v1118 = vrot.slane %v1116, 1
        %v1119 = vor.u32 %v1114, %v1118
        %v1121 = vshll.u32 %v1042, 16
        %v1123 = vrot.slane %v1121, 1
        %v1124 = vsel %vm539, %v1119, %v1123
        %v1126 = vshrl.u32 %v963, 16
        %v1128 = vshll.u32 %v963, 16
        %v1130 = vrot.slane %v1128, 1
        %v1131 = vor.u32 %v1126, %v1130
        %v1133 = vshll.u32 %v1043, 16
        %v1135 = vrot.slane %v1133, 1
        %v1136 = vsel %vm539, %v1131, %v1135
        %v1138 = vshrl.u32 %v964, 16
        %v1140 = vshll.u32 %v964, 16
        %v1142 = vrot.slane %v1140, 1
        %v1143 = vor.u32 %v1138, %v1142
        %v1145 = vshll.u32 %v1044, 16
        %v1147 = vrot.slane %v1145, 1
        %v1148 = vsel %vm539, %v1143, %v1147
        %v1150 = vshrl.u32 %v965, 16
        %v1152 = vshll.u32 %v965, 16
        %v1154 = vrot.slane %v1152, 1
        %v1155 = vor.u32 %v1150, %v1154
        %v1157 = vshll.u32 %v1045, 16
        %v1159 = vrot.slane %v1157, 1
        %v1160 = vsel %vm539, %v1155, %v1159
        %v1162 = vshrl.u32 %v966, 16
        %v1164 = vshll.u32 %v966, 16
        %v1166 = vrot.slane %v1164, 1
        %v1167 = vor.u32 %v1162, %v1166
        %v1169 = vshll.u32 %v1046, 16
        %v1171 = vrot.slane %v1169, 1
        %v1172 = vsel %vm539, %v1167, %v1171
        %v1174 = vshrl.u32 %v967, 16
        %v1176 = vshll.u32 %v967, 16
        %v1178 = vrot.slane %v1176, 1
        %v1179 = vor.u32 %v1174, %v1178
        %v1181 = vshll.u32 %v1047, 16
        %v1183 = vrot.slane %v1181, 1
        %v1184 = vsel %vm539, %v1179, %v1183
        %v1186 = vshrl.u32 %v968, 16
        %v1188 = vshll.u32 %v968, 16
        %v1190 = vrot.slane %v1188, 1
        %v1191 = vor.u32 %v1186, %v1190
        %v1193 = vshll.u32 %v1048, 16
        %v1195 = vrot.slane %v1193, 1
        %v1196 = vsel %vm539, %v1191, %v1195
        %v1198 = vshrl.u32 %v969, 16
        %v1200 = vshll.u32 %v969, 16
        %v1202 = vrot.slane %v1200, 1
        %v1203 = vor.u32 %v1198, %v1202
        %v1205 = vshll.u32 %v1049, 16
        %v1207 = vrot.slane %v1205, 1
        %v1208 = vsel %vm539, %v1203, %v1207
        %v1210 = vshrl.u32 %v970, 16
        %v1212 = vshll.u32 %v970, 16
        %v1214 = vrot.slane %v1212, 1
        %v1215 = vor.u32 %v1210, %v1214
        %v1217 = vshll.u32 %v1050, 16
        %v1219 = vrot.slane %v1217, 1
        %v1220 = vsel %vm539, %v1215, %v1219
        %v1222 = vshrl.u32 %v971, 16
        %v1224 = vshll.u32 %v971, 16
        %v1226 = vrot.slane %v1224, 1
        %v1227 = vor.u32 %v1222, %v1226
        %v1229 = vshll.u32 %v1051, 16
        %v1231 = vrot.slane %v1229, 1
        %v1232 = vsel %vm539, %v1227, %v1231
        %v1234 = vshrl.u32 %v972, 16
        %v1236 = vshll.u32 %v972, 16
        %v1238 = vrot.slane %v1236, 1
        %v1239 = vor.u32 %v1234, %v1238
        %v1241 = vshll.u32 %v1052, 16
        %v1243 = vrot.slane %v1241, 1
        %v1244 = vsel %vm539, %v1239, %v1243
        %1245 = vrot.lane.b32.xlu0 %v1064, 16
        %v1246 = vpop.permute.xlu0 %1245
        %1247 = vrot.lane.b32.xlu0 %v1076, 16
        %v1248 = vpop.permute.xlu0 %1247
        %1249 = vrot.lane.b32.xlu0 %v1088, 16
        %v1250 = vpop.permute.xlu0 %1249
        %1251 = vrot.lane.b32.xlu0 %v1100, 16
        %v1252 = vpop.permute.xlu0 %1251
        %1253 = vrot.lane.b32.xlu0 %v1112, 16
        %v1254 = vpop.permute.xlu0 %1253
        %1255 = vrot.lane.b32.xlu0 %v1124, 16
        %v1256 = vpop.permute.xlu0 %1255
        %1257 = vrot.lane.b32.xlu0 %v1136, 16
        %v1258 = vpop.permute.xlu0 %1257
        %1259 = vrot.lane.b32.xlu0 %v1148, 16
        %v1260 = vpop.permute.xlu0 %1259
        %1261 = vrot.lane.b32.xlu0 %v1160, 16
        %v1262 = vpop.permute.xlu0 %1261
        %1263 = vrot.lane.b32.xlu0 %v1172, 16
        %v1264 = vpop.permute.xlu0 %1263
        %1265 = vrot.lane.b32.xlu0 %v1184, 16
        %v1266 = vpop.permute.xlu0 %1265
        %1267 = vrot.lane.b32.xlu0 %v1196, 16
        %v1268 = vpop.permute.xlu0 %1267
        %1269 = vrot.lane.b32.xlu0 %v1208, 16
        %v1270 = vpop.permute.xlu0 %1269
        %1271 = vrot.lane.b32.xlu0 %v1220, 16
        %v1272 = vpop.permute.xlu0 %1271
        %1273 = vrot.lane.b32.xlu0 %v1232, 16
        %v1274 = vpop.permute.xlu0 %1273
        %1275 = vrot.lane.b32.xlu0 %v1244, 16
        %v1276 = vpop.permute.xlu0 %1275
        %v1293 = vunpack.c.l.b16 %v330
        %v1294 = vunpack.c.l.b16 %v331
        %v1295 = vunpack.c.l.b16 %v332
        %v1296 = vunpack.c.l.b16 %v333
        %v1297 = vunpack.c.l.b16 %v334
        %v1298 = vunpack.c.l.b16 %v335
        %v1299 = vunpack.c.l.b16 %v336
        %v1300 = vunpack.c.l.b16 %v337
        %v1301 = vunpack.c.l.b16 %v338
        %v1302 = vunpack.c.l.b16 %v339
        %v1303 = vunpack.c.l.b16 %v340
        %v1304 = vunpack.c.l.b16 %v341
        %v1305 = vunpack.c.l.b16 %v342
        %v1306 = vunpack.c.l.b16 %v343
        %v1307 = vunpack.c.l.b16 %v344
        %v1308 = vunpack.c.l.b16 %v345
        %v1309 = vpack.c.b16 %v926, %v1293
        %v1310 = vpack.c.b16 %v928, %v1294
        %v1311 = vpack.c.b16 %v930, %v1295
        %v1312 = vpack.c.b16 %v932, %v1296
        %v1313 = vpack.c.b16 %v934, %v1297
        %v1314 = vpack.c.b16 %v936, %v1298
        %v1315 = vpack.c.b16 %v938, %v1299
        %v1316 = vpack.c.b16 %v940, %v1300
        %v1317 = vpack.c.b16 %v942, %v1301
        %v1318 = vpack.c.b16 %v944, %v1302
        %v1319 = vpack.c.b16 %v946, %v1303
        %v1320 = vpack.c.b16 %v948, %v1304
        %v1321 = vpack.c.b16 %v950, %v1305
        %v1322 = vpack.c.b16 %v952, %v1306
        %v1323 = vpack.c.b16 %v954, %v1307
        %v1324 = vpack.c.b16 %v956, %v1308
        %v1325 = vrot.slane %v1309, 1
        %v1326 = vrot.slane %v1037, 1
        %v1327 = vsel %vm812, %v1325, %v1326
        %v1328 = vrot.slane %v1310, 1
        %v1329 = vrot.slane %v1038, 1
        %v1330 = vsel %vm812, %v1328, %v1329
        %v1331 = vrot.slane %v1311, 1
        %v1332 = vrot.slane %v1039, 1
        %v1333 = vsel %vm812, %v1331, %v1332
        %v1334 = vrot.slane %v1312, 1
        %v1335 = vrot.slane %v1040, 1
        %v1336 = vsel %vm812, %v1334, %v1335
        %v1337 = vrot.slane %v1313, 1
        %v1338 = vrot.slane %v1041, 1
        %v1339 = vsel %vm812, %v1337, %v1338
        %v1340 = vrot.slane %v1314, 1
        %v1341 = vrot.slane %v1042, 1
        %v1342 = vsel %vm812, %v1340, %v1341
        %v1343 = vrot.slane %v1315, 1
        %v1344 = vrot.slane %v1043, 1
        %v1345 = vsel %vm812, %v1343, %v1344
        %v1346 = vrot.slane %v1316, 1
        %v1347 = vrot.slane %v1044, 1
        %v1348 = vsel %vm812, %v1346, %v1347
        %v1349 = vrot.slane %v1317, 1
        %v1350 = vrot.slane %v1045, 1
        %v1351 = vsel %vm812, %v1349, %v1350
        %v1352 = vrot.slane %v1318, 1
        %v1353 = vrot.slane %v1046, 1
        %v1354 = vsel %vm812, %v1352, %v1353
        %v1355 = vrot.slane %v1319, 1
        %v1356 = vrot.slane %v1047, 1
        %v1357 = vsel %vm812, %v1355, %v1356
        %v1358 = vrot.slane %v1320, 1
        %v1359 = vrot.slane %v1048, 1
        %v1360 = vsel %vm812, %v1358, %v1359
        %v1361 = vrot.slane %v1321, 1
        %v1362 = vrot.slane %v1049, 1
        %v1363 = vsel %vm812, %v1361, %v1362
        %v1364 = vrot.slane %v1322, 1
        %v1365 = vrot.slane %v1050, 1
        %v1366 = vsel %vm812, %v1364, %v1365
        %v1367 = vrot.slane %v1323, 1
        %v1368 = vrot.slane %v1051, 1
        %v1369 = vsel %vm812, %v1367, %v1368
        %v1370 = vrot.slane %v1324, 1
        %v1371 = vrot.slane %v1052, 1
        %v1372 = vsel %vm812, %v1370, %v1371
        %1373 = vrot.lane.b32.xlu0 %v1327, 20
        %v1374 = vpop.permute.xlu0 %1373
        %1375 = vrot.lane.b32.xlu0 %v1330, 20
        %v1376 = vpop.permute.xlu0 %1375
        %1377 = vrot.lane.b32.xlu0 %v1333, 20
        %v1378 = vpop.permute.xlu0 %1377
        %1379 = vrot.lane.b32.xlu0 %v1336, 20
        %v1380 = vpop.permute.xlu0 %1379
        %1381 = vrot.lane.b32.xlu0 %v1339, 20
        %v1382 = vpop.permute.xlu0 %1381
        %1383 = vrot.lane.b32.xlu0 %v1342, 20
        %v1384 = vpop.permute.xlu0 %1383
        %1385 = vrot.lane.b32.xlu0 %v1345, 20
        %v1386 = vpop.permute.xlu0 %1385
        %1387 = vrot.lane.b32.xlu0 %v1348, 20
        %v1388 = vpop.permute.xlu0 %1387
        %1389 = vrot.lane.b32.xlu0 %v1351, 20
        %v1390 = vpop.permute.xlu0 %1389
        %1391 = vrot.lane.b32.xlu0 %v1354, 20
        %v1392 = vpop.permute.xlu0 %1391
        %1393 = vrot.lane.b32.xlu0 %v1357, 20
        %v1394 = vpop.permute.xlu0 %1393
        %1395 = vrot.lane.b32.xlu0 %v1360, 20
        %v1396 = vpop.permute.xlu0 %1395
        %1397 = vrot.lane.b32.xlu0 %v1363, 20
        %v1398 = vpop.permute.xlu0 %1397
        %1399 = vrot.lane.b32.xlu0 %v1366, 20
        %v1400 = vpop.permute.xlu0 %1399
        %1401 = vrot.lane.b32.xlu0 %v1369, 20
        %v1402 = vpop.permute.xlu0 %1401
        %1403 = vrot.lane.b32.xlu0 %v1372, 20
        %v1404 = vpop.permute.xlu0 %1403
        %v1437 = vunpack.c.l.b16 %v347
        %v1438 = vunpack.c.l.b16 %v348
        %v1439 = vunpack.c.l.b16 %v349
        %v1440 = vunpack.c.l.b16 %v350
        %v1441 = vunpack.c.l.b16 %v351
        %v1442 = vunpack.c.l.b16 %v352
        %v1443 = vunpack.c.l.b16 %v353
        %v1444 = vunpack.c.l.b16 %v354
        %v1445 = vunpack.c.l.b16 %v355
        %v1446 = vunpack.c.l.b16 %v356
        %v1447 = vunpack.c.l.b16 %v357
        %v1448 = vunpack.c.l.b16 %v358
        %v1449 = vunpack.c.l.b16 %v359
        %v1450 = vunpack.c.l.b16 %v360
        %v1451 = vunpack.c.l.b16 %v361
        %v1452 = vunpack.c.l.b16 %v362
        %v1453 = vunpack.c.l.b16 %v363
        %v1454 = vunpack.c.l.b16 %v364
        %v1455 = vunpack.c.l.b16 %v365
        %v1456 = vunpack.c.l.b16 %v366
        %v1457 = vunpack.c.l.b16 %v367
        %v1458 = vunpack.c.l.b16 %v368
        %v1459 = vunpack.c.l.b16 %v369
        %v1460 = vunpack.c.l.b16 %v370
        %v1461 = vunpack.c.l.b16 %v371
        %v1462 = vunpack.c.l.b16 %v372
        %v1463 = vunpack.c.l.b16 %v373
        %v1464 = vunpack.c.l.b16 %v374
        %v1465 = vunpack.c.l.b16 %v375
        %v1466 = vunpack.c.l.b16 %v376
        %v1467 = vunpack.c.l.b16 %v377
        %v1468 = vunpack.c.l.b16 %v378
        %v1469 = vpack.c.b16 %v1438, %v1437
        %v1470 = vpack.c.b16 %v1440, %v1439
        %v1471 = vpack.c.b16 %v1442, %v1441
        %v1472 = vpack.c.b16 %v1444, %v1443
        %v1473 = vpack.c.b16 %v1446, %v1445
        %v1474 = vpack.c.b16 %v1448, %v1447
        %v1475 = vpack.c.b16 %v1450, %v1449
        %v1476 = vpack.c.b16 %v1452, %v1451
        %v1477 = vpack.c.b16 %v1454, %v1453
        %v1478 = vpack.c.b16 %v1456, %v1455
        %v1479 = vpack.c.b16 %v1458, %v1457
        %v1480 = vpack.c.b16 %v1460, %v1459
        %v1481 = vpack.c.b16 %v1462, %v1461
        %v1482 = vpack.c.b16 %v1464, %v1463
        %v1483 = vpack.c.b16 %v1466, %v1465
        %v1484 = vpack.c.b16 %v1468, %v1467
        %1485 = vrot.lane.b32.xlu0 %v1469, 24
        %v1486 = vpop.permute.xlu0 %1485
        %1487 = vrot.lane.b32.xlu0 %v1470, 24
        %v1488 = vpop.permute.xlu0 %1487
        %1489 = vrot.lane.b32.xlu0 %v1471, 24
        %v1490 = vpop.permute.xlu0 %1489
        %1491 = vrot.lane.b32.xlu0 %v1472, 24
        %v1492 = vpop.permute.xlu0 %1491
        %1493 = vrot.lane.b32.xlu0 %v1473, 24
        %v1494 = vpop.permute.xlu0 %1493
        %1495 = vrot.lane.b32.xlu0 %v1474, 24
        %v1496 = vpop.permute.xlu0 %1495
        %1497 = vrot.lane.b32.xlu0 %v1475, 24
        %v1498 = vpop.permute.xlu0 %1497
        %1499 = vrot.lane.b32.xlu0 %v1476, 24
        %v1500 = vpop.permute.xlu0 %1499
        %1501 = vrot.lane.b32.xlu0 %v1477, 24
        %v1502 = vpop.permute.xlu0 %1501
        %1503 = vrot.lane.b32.xlu0 %v1478, 24
        %v1504 = vpop.permute.xlu0 %1503
        %1505 = vrot.lane.b32.xlu0 %v1479, 24
        %v1506 = vpop.permute.xlu0 %1505
        %1507 = vrot.lane.b32.xlu0 %v1480, 24
        %v1508 = vpop.permute.xlu0 %1507
        %1509 = vrot.lane.b32.xlu0 %v1481, 24
        %v1510 = vpop.permute.xlu0 %1509
        %1511 = vrot.lane.b32.xlu0 %v1482, 24
        %v1512 = vpop.permute.xlu0 %1511
        %1513 = vrot.lane.b32.xlu0 %v1483, 24
        %v1514 = vpop.permute.xlu0 %1513
        %1515 = vrot.lane.b32.xlu0 %v1484, 24
        %v1516 = vpop.permute.xlu0 %1515
        %v1533 = vunpack.c.l.b16 %v379
        %v1534 = vunpack.c.l.b16 %v380
        %v1535 = vunpack.c.l.b16 %v381
        %v1536 = vunpack.c.l.b16 %v382
        %v1537 = vunpack.c.l.b16 %v383
        %v1538 = vunpack.c.l.b16 %v384
        %v1539 = vunpack.c.l.b16 %v385
        %v1540 = vunpack.c.l.b16 %v386
        %v1541 = vunpack.c.l.b16 %v387
        %v1542 = vunpack.c.l.b16 %v388
        %v1543 = vunpack.c.l.b16 %v389
        %v1544 = vunpack.c.l.b16 %v390
        %v1545 = vunpack.c.l.b16 %v391
        %v1546 = vunpack.c.l.b16 %v392
        %v1547 = vunpack.c.l.b16 %v393
        %v1548 = vunpack.c.l.b16 %v394
        %v1549 = vpack.c.b16 %v1533, %v1533
        %v1550 = vpack.c.b16 %v1534, %v1534
        %v1551 = vpack.c.b16 %v1535, %v1535
        %v1552 = vpack.c.b16 %v1536, %v1536
        %v1553 = vpack.c.b16 %v1537, %v1537
        %v1554 = vpack.c.b16 %v1538, %v1538
        %v1555 = vpack.c.b16 %v1539, %v1539
        %v1556 = vpack.c.b16 %v1540, %v1540
        %v1557 = vpack.c.b16 %v1541, %v1541
        %v1558 = vpack.c.b16 %v1542, %v1542
        %v1559 = vpack.c.b16 %v1543, %v1543
        %v1560 = vpack.c.b16 %v1544, %v1544
        %v1561 = vpack.c.b16 %v1545, %v1545
        %v1562 = vpack.c.b16 %v1546, %v1546
        %v1563 = vpack.c.b16 %v1547, %v1547
        %v1564 = vpack.c.b16 %v1548, %v1548
        %v1566 = vshrl.u32 %v1469, 16
        %v1568 = vshll.u32 %v1469, 16
        %v1570 = vrot.slane %v1568, 1
        %v1571 = vor.u32 %v1566, %v1570
        %v1573 = vshll.u32 %v1549, 16
        %v1575 = vrot.slane %v1573, 1
        %v1576 = vsel %vm539, %v1571, %v1575
        %v1578 = vshrl.u32 %v1470, 16
        %v1580 = vshll.u32 %v1470, 16
        %v1582 = vrot.slane %v1580, 1
        %v1583 = vor.u32 %v1578, %v1582
        %v1585 = vshll.u32 %v1550, 16
        %v1587 = vrot.slane %v1585, 1
        %v1588 = vsel %vm539, %v1583, %v1587
        %v1590 = vshrl.u32 %v1471, 16
        %v1592 = vshll.u32 %v1471, 16
        %v1594 = vrot.slane %v1592, 1
        %v1595 = vor.u32 %v1590, %v1594
        %v1597 = vshll.u32 %v1551, 16
        %v1599 = vrot.slane %v1597, 1
        %v1600 = vsel %vm539, %v1595, %v1599
        %v1602 = vshrl.u32 %v1472, 16
        %v1604 = vshll.u32 %v1472, 16
        %v1606 = vrot.slane %v1604, 1
        %v1607 = vor.u32 %v1602, %v1606
        %v1609 = vshll.u32 %v1552, 16
        %v1611 = vrot.slane %v1609, 1
        %v1612 = vsel %vm539, %v1607, %v1611
        %v1614 = vshrl.u32 %v1473, 16
        %v1616 = vshll.u32 %v1473, 16
        %v1618 = vrot.slane %v1616, 1
        %v1619 = vor.u32 %v1614, %v1618
        %v1621 = vshll.u32 %v1553, 16
        %v1623 = vrot.slane %v1621, 1
        %v1624 = vsel %vm539, %v1619, %v1623
        %v1626 = vshrl.u32 %v1474, 16
        %v1628 = vshll.u32 %v1474, 16
        %v1630 = vrot.slane %v1628, 1
        %v1631 = vor.u32 %v1626, %v1630
        %v1633 = vshll.u32 %v1554, 16
        %v1635 = vrot.slane %v1633, 1
        %v1636 = vsel %vm539, %v1631, %v1635
        %v1638 = vshrl.u32 %v1475, 16
        %v1640 = vshll.u32 %v1475, 16
        %v1642 = vrot.slane %v1640, 1
        %v1643 = vor.u32 %v1638, %v1642
        %v1645 = vshll.u32 %v1555, 16
        %v1647 = vrot.slane %v1645, 1
        %v1648 = vsel %vm539, %v1643, %v1647
        %v1650 = vshrl.u32 %v1476, 16
        %v1652 = vshll.u32 %v1476, 16
        %v1654 = vrot.slane %v1652, 1
        %v1655 = vor.u32 %v1650, %v1654
        %v1657 = vshll.u32 %v1556, 16
        %v1659 = vrot.slane %v1657, 1
        %v1660 = vsel %vm539, %v1655, %v1659
        %v1662 = vshrl.u32 %v1477, 16
        %v1664 = vshll.u32 %v1477, 16
        %v1666 = vrot.slane %v1664, 1
        %v1667 = vor.u32 %v1662, %v1666
        %v1669 = vshll.u32 %v1557, 16
        %v1671 = vrot.slane %v1669, 1
        %v1672 = vsel %vm539, %v1667, %v1671
        %v1674 = vshrl.u32 %v1478, 16
        %v1676 = vshll.u32 %v1478, 16
        %v1678 = vrot.slane %v1676, 1
        %v1679 = vor.u32 %v1674, %v1678
        %v1681 = vshll.u32 %v1558, 16
        %v1683 = vrot.slane %v1681, 1
        %v1684 = vsel %vm539, %v1679, %v1683
        %v1686 = vshrl.u32 %v1479, 16
        %v1688 = vshll.u32 %v1479, 16
        %v1690 = vrot.slane %v1688, 1
        %v1691 = vor.u32 %v1686, %v1690
        %v1693 = vshll.u32 %v1559, 16
        %v1695 = vrot.slane %v1693, 1
        %v1696 = vsel %vm539, %v1691, %v1695
        %v1698 = vshrl.u32 %v1480, 16
        %v1700 = vshll.u32 %v1480, 16
        %v1702 = vrot.slane %v1700, 1
        %v1703 = vor.u32 %v1698, %v1702
        %v1705 = vshll.u32 %v1560, 16
        %v1707 = vrot.slane %v1705, 1
        %v1708 = vsel %vm539, %v1703, %v1707
        %v1710 = vshrl.u32 %v1481, 16
        %v1712 = vshll.u32 %v1481, 16
        %v1714 = vrot.slane %v1712, 1
        %v1715 = vor.u32 %v1710, %v1714
        %v1717 = vshll.u32 %v1561, 16
        %v1719 = vrot.slane %v1717, 1
        %v1720 = vsel %vm539, %v1715, %v1719
        %v1722 = vshrl.u32 %v1482, 16
        %v1724 = vshll.u32 %v1482, 16
        %v1726 = vrot.slane %v1724, 1
        %v1727 = vor.u32 %v1722, %v1726
        %v1729 = vshll.u32 %v1562, 16
        %v1731 = vrot.slane %v1729, 1
        %v1732 = vsel %vm539, %v1727, %v1731
        %v1734 = vshrl.u32 %v1483, 16
        %v1736 = vshll.u32 %v1483, 16
        %v1738 = vrot.slane %v1736, 1
        %v1739 = vor.u32 %v1734, %v1738
        %v1741 = vshll.u32 %v1563, 16
        %v1743 = vrot.slane %v1741, 1
        %v1744 = vsel %vm539, %v1739, %v1743
        %v1746 = vshrl.u32 %v1484, 16
        %v1748 = vshll.u32 %v1484, 16
        %v1750 = vrot.slane %v1748, 1
        %v1751 = vor.u32 %v1746, %v1750
        %v1753 = vshll.u32 %v1564, 16
        %v1755 = vrot.slane %v1753, 1
        %v1756 = vsel %vm539, %v1751, %v1755
        %1757 = vrot.lane.b32.xlu0 %v1576, 28
        %v1758 = vpop.permute.xlu0 %1757
        %1759 = vrot.lane.b32.xlu0 %v1588, 28
        %v1760 = vpop.permute.xlu0 %1759
        %1761 = vrot.lane.b32.xlu0 %v1600, 28
        %v1762 = vpop.permute.xlu0 %1761
        %1763 = vrot.lane.b32.xlu0 %v1612, 28
        %v1764 = vpop.permute.xlu0 %1763
        %1765 = vrot.lane.b32.xlu0 %v1624, 28
        %v1766 = vpop.permute.xlu0 %1765
        %1767 = vrot.lane.b32.xlu0 %v1636, 28
        %v1768 = vpop.permute.xlu0 %1767
        %1769 = vrot.lane.b32.xlu0 %v1648, 28
        %v1770 = vpop.permute.xlu0 %1769
        %1771 = vrot.lane.b32.xlu0 %v1660, 28
        %v1772 = vpop.permute.xlu0 %1771
        %1773 = vrot.lane.b32.xlu0 %v1672, 28
        %v1774 = vpop.permute.xlu0 %1773
        %1775 = vrot.lane.b32.xlu0 %v1684, 28
        %v1776 = vpop.permute.xlu0 %1775
        %1777 = vrot.lane.b32.xlu0 %v1696, 28
        %v1778 = vpop.permute.xlu0 %1777
        %1779 = vrot.lane.b32.xlu0 %v1708, 28
        %v1780 = vpop.permute.xlu0 %1779
        %1781 = vrot.lane.b32.xlu0 %v1720, 28
        %v1782 = vpop.permute.xlu0 %1781
        %1783 = vrot.lane.b32.xlu0 %v1732, 28
        %v1784 = vpop.permute.xlu0 %1783
        %1785 = vrot.lane.b32.xlu0 %v1744, 28
        %v1786 = vpop.permute.xlu0 %1785
        %1787 = vrot.lane.b32.xlu0 %v1756, 28
        %v1788 = vpop.permute.xlu0 %1787
        %v1805 = vunpack.c.l.b16 %v395
        %v1806 = vunpack.c.l.b16 %v396
        %v1807 = vunpack.c.l.b16 %v397
        %v1808 = vunpack.c.l.b16 %v398
        %v1809 = vunpack.c.l.b16 %v399
        %v1810 = vunpack.c.l.b16 %v400
        %v1811 = vunpack.c.l.b16 %v401
        %v1812 = vunpack.c.l.b16 %v402
        %v1813 = vunpack.c.l.b16 %v403
        %v1814 = vunpack.c.l.b16 %v404
        %v1815 = vunpack.c.l.b16 %v405
        %v1816 = vunpack.c.l.b16 %v406
        %v1817 = vunpack.c.l.b16 %v407
        %v1818 = vunpack.c.l.b16 %v408
        %v1819 = vunpack.c.l.b16 %v409
        %v1820 = vunpack.c.l.b16 %v410
        %v1821 = vpack.c.b16 %v1438, %v1805
        %v1822 = vpack.c.b16 %v1440, %v1806
        %v1823 = vpack.c.b16 %v1442, %v1807
        %v1824 = vpack.c.b16 %v1444, %v1808
        %v1825 = vpack.c.b16 %v1446, %v1809
        %v1826 = vpack.c.b16 %v1448, %v1810
        %v1827 = vpack.c.b16 %v1450, %v1811
        %v1828 = vpack.c.b16 %v1452, %v1812
        %v1829 = vpack.c.b16 %v1454, %v1813
        %v1830 = vpack.c.b16 %v1456, %v1814
        %v1831 = vpack.c.b16 %v1458, %v1815
        %v1832 = vpack.c.b16 %v1460, %v1816
        %v1833 = vpack.c.b16 %v1462, %v1817
        %v1834 = vpack.c.b16 %v1464, %v1818
        %v1835 = vpack.c.b16 %v1466, %v1819
        %v1836 = vpack.c.b16 %v1468, %v1820
        %v1837 = vrot.slane %v1821, 1
        %v1838 = vrot.slane %v1549, 1
        %v1839 = vsel %vm812, %v1837, %v1838
        %v1840 = vrot.slane %v1822, 1
        %v1841 = vrot.slane %v1550, 1
        %v1842 = vsel %vm812, %v1840, %v1841
        %v1843 = vrot.slane %v1823, 1
        %v1844 = vrot.slane %v1551, 1
        %v1845 = vsel %vm812, %v1843, %v1844
        %v1846 = vrot.slane %v1824, 1
        %v1847 = vrot.slane %v1552, 1
        %v1848 = vsel %vm812, %v1846, %v1847
        %v1849 = vrot.slane %v1825, 1
        %v1850 = vrot.slane %v1553, 1
        %v1851 = vsel %vm812, %v1849, %v1850
        %v1852 = vrot.slane %v1826, 1
        %v1853 = vrot.slane %v1554, 1
        %v1854 = vsel %vm812, %v1852, %v1853
        %v1855 = vrot.slane %v1827, 1
        %v1856 = vrot.slane %v1555, 1
        %v1857 = vsel %vm812, %v1855, %v1856
        %v1858 = vrot.slane %v1828, 1
        %v1859 = vrot.slane %v1556, 1
        %v1860 = vsel %vm812, %v1858, %v1859
        %v1861 = vrot.slane %v1829, 1
        %v1862 = vrot.slane %v1557, 1
        %v1863 = vsel %vm812, %v1861, %v1862
        %v1864 = vrot.slane %v1830, 1
        %v1865 = vrot.slane %v1558, 1
        %v1866 = vsel %vm812, %v1864, %v1865
        %v1867 = vrot.slane %v1831, 1
        %v1868 = vrot.slane %v1559, 1
        %v1869 = vsel %vm812, %v1867, %v1868
        %v1870 = vrot.slane %v1832, 1
        %v1871 = vrot.slane %v1560, 1
        %v1872 = vsel %vm812, %v1870, %v1871
        %v1873 = vrot.slane %v1833, 1
        %v1874 = vrot.slane %v1561, 1
        %v1875 = vsel %vm812, %v1873, %v1874
        %v1876 = vrot.slane %v1834, 1
        %v1877 = vrot.slane %v1562, 1
        %v1878 = vsel %vm812, %v1876, %v1877
        %v1879 = vrot.slane %v1835, 1
        %v1880 = vrot.slane %v1563, 1
        %v1881 = vsel %vm812, %v1879, %v1880
        %v1882 = vrot.slane %v1836, 1
        %v1883 = vrot.slane %v1564, 1
        %v1884 = vsel %vm812, %v1882, %v1883
        %1885 = vrot.lane.b32.xlu0 %v1839, 32
        %v1886 = vpop.permute.xlu0 %1885
        %1887 = vrot.lane.b32.xlu0 %v1842, 32
        %v1888 = vpop.permute.xlu0 %1887
        %1889 = vrot.lane.b32.xlu0 %v1845, 32
        %v1890 = vpop.permute.xlu0 %1889
        %1891 = vrot.lane.b32.xlu0 %v1848, 32
        %v1892 = vpop.permute.xlu0 %1891
        %1893 = vrot.lane.b32.xlu0 %v1851, 32
        %v1894 = vpop.permute.xlu0 %1893
        %1895 = vrot.lane.b32.xlu0 %v1854, 32
        %v1896 = vpop.permute.xlu0 %1895
        %1897 = vrot.lane.b32.xlu0 %v1857, 32
        %v1898 = vpop.permute.xlu0 %1897
        %1899 = vrot.lane.b32.xlu0 %v1860, 32
        %v1900 = vpop.permute.xlu0 %1899
        %1901 = vrot.lane.b32.xlu0 %v1863, 32
        %v1902 = vpop.permute.xlu0 %1901
        %1903 = vrot.lane.b32.xlu0 %v1866, 32
        %v1904 = vpop.permute.xlu0 %1903
        %1905 = vrot.lane.b32.xlu0 %v1869, 32
        %v1906 = vpop.permute.xlu0 %1905
        %1907 = vrot.lane.b32.xlu0 %v1872, 32
        %v1908 = vpop.permute.xlu0 %1907
        %1909 = vrot.lane.b32.xlu0 %v1875, 32
        %v1910 = vpop.permute.xlu0 %1909
        %1911 = vrot.lane.b32.xlu0 %v1878, 32
        %v1912 = vpop.permute.xlu0 %1911
        %1913 = vrot.lane.b32.xlu0 %v1881, 32
        %v1914 = vpop.permute.xlu0 %1913
        %1915 = vrot.lane.b32.xlu0 %v1884, 32
        %v1916 = vpop.permute.xlu0 %1915
        %vm1917 = vcmask 31744
        %v1919 = vsel %vm1917, %v475, %v733
        %v1921 = vsel %vm1917, %v476, %v735
        %v1923 = vsel %vm1917, %v477, %v737
        %v1925 = vsel %vm1917, %v478, %v739
        %v1927 = vsel %vm1917, %v479, %v741
        %v1929 = vsel %vm1917, %v480, %v743
        %v1931 = vsel %vm1917, %v481, %v745
        %v1933 = vsel %vm1917, %v482, %v747
        %v1935 = vsel %vm1917, %v483, %v749
        %v1937 = vsel %vm1917, %v484, %v751
        %v1939 = vsel %vm1917, %v485, %v753
        %v1941 = vsel %vm1917, %v486, %v755
        %v1943 = vsel %vm1917, %v487, %v757
        %v1945 = vsel %vm1917, %v488, %v759
        %v1947 = vsel %vm1917, %v489, %v761
        %v1949 = vsel %vm1917, %v490, %v763
        %vm1950 = vcmask 64512
        %v1952 = vsel %vm1950, %v1919, %v862
        %v1954 = vsel %vm1950, %v1921, %v864
        %v1956 = vsel %vm1950, %v1923, %v866
        %v1958 = vsel %vm1950, %v1925, %v868
        %v1960 = vsel %vm1950, %v1927, %v870
        %v1962 = vsel %vm1950, %v1929, %v872
        %v1964 = vsel %vm1950, %v1931, %v874
        %v1966 = vsel %vm1950, %v1933, %v876
        %v1968 = vsel %vm1950, %v1935, %v878
        %v1970 = vsel %vm1950, %v1937, %v880
        %v1972 = vsel %vm1950, %v1939, %v882
        %v1974 = vsel %vm1950, %v1941, %v884
        %v1976 = vsel %vm1950, %v1943, %v886
        %v1978 = vsel %vm1950, %v1945, %v888
        %v1980 = vsel %vm1950, %v1947, %v890
        %v1982 = vsel %vm1950, %v1949, %v892
        %vm1983 = vcmask 97280
        %v1985 = vsel %vm1983, %v1952, %v974
        %v1987 = vsel %vm1983, %v1954, %v976
        %v1989 = vsel %vm1983, %v1956, %v978
        %v1991 = vsel %vm1983, %v1958, %v980
        %v1993 = vsel %vm1983, %v1960, %v982
        %v1995 = vsel %vm1983, %v1962, %v984
        %v1997 = vsel %vm1983, %v1964, %v986
        %v1999 = vsel %vm1983, %v1966, %v988
        %v2001 = vsel %vm1983, %v1968, %v990
        %v2003 = vsel %vm1983, %v1970, %v992
        %v2005 = vsel %vm1983, %v1972, %v994
        %v2007 = vsel %vm1983, %v1974, %v996
        %v2009 = vsel %vm1983, %v1976, %v998
        %v2011 = vsel %vm1983, %v1978, %v1000
        %v2013 = vsel %vm1983, %v1980, %v1002
        %v2015 = vsel %vm1983, %v1982, %v1004
        %vm2016 = vcmask 130048
        %v2018 = vsel %vm2016, %v1985, %v1246
        %v2020 = vsel %vm2016, %v1987, %v1248
        %v2022 = vsel %vm2016, %v1989, %v1250
        %v2024 = vsel %vm2016, %v1991, %v1252
        %v2026 = vsel %vm2016, %v1993, %v1254
        %v2028 = vsel %vm2016, %v1995, %v1256
        %v2030 = vsel %vm2016, %v1997, %v1258
        %v2032 = vsel %vm2016, %v1999, %v1260
        %v2034 = vsel %vm2016, %v2001, %v1262
        %v2036 = vsel %vm2016, %v2003, %v1264
        %v2038 = vsel %vm2016, %v2005, %v1266
        %v2040 = vsel %vm2016, %v2007, %v1268
        %v2042 = vsel %vm2016, %v2009, %v1270
        %v2044 = vsel %vm2016, %v2011, %v1272
        %v2046 = vsel %vm2016, %v2013, %v1274
        %v2048 = vsel %vm2016, %v2015, %v1276
        %vm2049 = vcmask 162816
        %v2051 = vsel %vm2049, %v2018, %v1374
        %v2053 = vsel %vm2049, %v2020, %v1376
        %v2055 = vsel %vm2049, %v2022, %v1378
        %v2057 = vsel %vm2049, %v2024, %v1380
        %v2059 = vsel %vm2049, %v2026, %v1382
        %v2061 = vsel %vm2049, %v2028, %v1384
        %v2063 = vsel %vm2049, %v2030, %v1386
        %v2065 = vsel %vm2049, %v2032, %v1388
        %v2067 = vsel %vm2049, %v2034, %v1390
        %v2069 = vsel %vm2049, %v2036, %v1392
        %v2071 = vsel %vm2049, %v2038, %v1394
        %v2073 = vsel %vm2049, %v2040, %v1396
        %v2075 = vsel %vm2049, %v2042, %v1398
        %v2077 = vsel %vm2049, %v2044, %v1400
        %v2079 = vsel %vm2049, %v2046, %v1402
        %v2081 = vsel %vm2049, %v2048, %v1404
        %vm2082 = vcmask 195584
        %v2084 = vsel %vm2082, %v2051, %v1486
        %v2086 = vsel %vm2082, %v2053, %v1488
        %v2088 = vsel %vm2082, %v2055, %v1490
        %v2090 = vsel %vm2082, %v2057, %v1492
        %v2092 = vsel %vm2082, %v2059, %v1494
        %v2094 = vsel %vm2082, %v2061, %v1496
        %v2096 = vsel %vm2082, %v2063, %v1498
        %v2098 = vsel %vm2082, %v2065, %v1500
        %v2100 = vsel %vm2082, %v2067, %v1502
        %v2102 = vsel %vm2082, %v2069, %v1504
        %v2104 = vsel %vm2082, %v2071, %v1506
        %v2106 = vsel %vm2082, %v2073, %v1508
        %v2108 = vsel %vm2082, %v2075, %v1510
        %v2110 = vsel %vm2082, %v2077, %v1512
        %v2112 = vsel %vm2082, %v2079, %v1514
        %v2114 = vsel %vm2082, %v2081, %v1516
        %vm2115 = vcmask 228352
        %v2117 = vsel %vm2115, %v2084, %v1758
        %v2119 = vsel %vm2115, %v2086, %v1760
        %v2121 = vsel %vm2115, %v2088, %v1762
        %v2123 = vsel %vm2115, %v2090, %v1764
        %v2125 = vsel %vm2115, %v2092, %v1766
        %v2127 = vsel %vm2115, %v2094, %v1768
        %v2129 = vsel %vm2115, %v2096, %v1770
        %v2131 = vsel %vm2115, %v2098, %v1772
        %v2133 = vsel %vm2115, %v2100, %v1774
        %v2135 = vsel %vm2115, %v2102, %v1776
        %v2137 = vsel %vm2115, %v2104, %v1778
        %v2139 = vsel %vm2115, %v2106, %v1780
        %v2141 = vsel %vm2115, %v2108, %v1782
        %v2143 = vsel %vm2115, %v2110, %v1784
        %v2145 = vsel %vm2115, %v2112, %v1786
        %v2147 = vsel %vm2115, %v2114, %v1788
        %vm2148 = vcmask 261120
        %v2150 = vsel %vm2148, %v2117, %v1886
        %v2152 = vsel %vm2148, %v2119, %v1888
        %v2154 = vsel %vm2148, %v2121, %v1890
        %v2156 = vsel %vm2148, %v2123, %v1892
        %v2158 = vsel %vm2148, %v2125, %v1894
        %v2160 = vsel %vm2148, %v2127, %v1896
        %v2162 = vsel %vm2148, %v2129, %v1898
        %v2164 = vsel %vm2148, %v2131, %v1900
        %v2166 = vsel %vm2148, %v2133, %v1902
        %v2168 = vsel %vm2148, %v2135, %v1904
        %v2170 = vsel %vm2148, %v2137, %v1906
        %v2172 = vsel %vm2148, %v2139, %v1908
        %v2174 = vsel %vm2148, %v2141, %v1910
        %v2176 = vsel %vm2148, %v2143, %v1912
        %v2178 = vsel %vm2148, %v2145, %v1914
        %v2180 = vsel %vm2148, %v2147, %v1916
        %v2181 = vld [vmem:[#allocation5] sm:$0xf]
        %v2182 = vld [vmem:[#allocation5 + $0x4] sm:$0xf]
        %v2183 = vld [vmem:[#allocation5 + $0x8] sm:$0xf]
        %v2184 = vld [vmem:[#allocation5 + $0xc] sm:$0xf]
        %v2185 = vld [vmem:[#allocation5 + $0x10] sm:$0x3]
        %v2186 = vld [vmem:[#allocation7] sm:$0x1]
        %v2188 = vlaneseq
        %v2189 = vshrl.u32 %v2188, 7
        %v2190 = vsub.s32 0, %v2189
        %v2191 = vrot.slane %v2186, %v2190
        %v2198 = vunpack.c.l.b16 %v2181
        %v2199 = vunpack.c.l.b16 %v2182
        %v2200 = vunpack.c.l.b16 %v2183
        %v2201 = vunpack.c.l.b16 %v2184
        %v2202 = vunpack.c.l.b16 %v2185
        %v2203 = vpack.c.b16 %v2199, %v2198
        %v2204 = vpack.c.b16 %v2201, %v2200
        %v2205 = vpack.c.b16 %v2202, %v2202
        %vm2208 = vcmask 293888
        %v2209 = vsel %vm2208, %v2150, 0
        %v2211 = vsel %vm2208, %v2152, 0
        %v2213 = vsel %vm2208, %v2154, 0
        %v2215 = vsel %vm2208, %v2156, 0
        %v2217 = vsel %vm2208, %v2158, 0
        %v2219 = vsel %vm2208, %v2160, 0
        %v2221 = vsel %vm2208, %v2162, 0
        %v2223 = vsel %vm2208, %v2164, 0
        %v2225 = vsel %vm2208, %v2166, 0
        %v2227 = vsel %vm2208, %v2168, 0
        %v2229 = vsel %vm2208, %v2170, 0
        %v2231 = vsel %vm2208, %v2172, 0
        %v2233 = vsel %vm2208, %v2174, 0
        %v2235 = vsel %vm2208, %v2176, 0
        %v2237 = vsel %vm2208, %v2178, 0
        %v2239 = vsel %vm2208, %v2180, 0
        %vm2241 = vcmask 1041408
        %v2243 = vsel %vm2241, %v2205, 0
        %2245 = vmatprep.subr.bf16.mxu0 0
        %2246 = vmatpush1.bf16.msra.mxu0 %v2203
        %2247 = vmatprep.subr.bf16.mxu0 0
        %2248 = vmatpush1.bf16.msra.mxu0 %v2204
        %2249 = vmatprep.subr.bf16.mxu0 0
        %2250 = vmatpush1.bf16.msra.mxu0 %v2243
        %2251 = vmatprep.subr.bf16.mxu0 0
        %2252 = vmatpush1.bf16.msra.mxu0 0
        %2253 = vmatprep.subr.bf16.mxu0 0
        %2254 = vmatpush1.bf16.msra.mxu0 0
        %2255 = vmatprep.subr.bf16.mxu0 0
        %2256 = vmatpush1.bf16.msra.mxu0 0
        %2257 = vmatprep.subr.bf16.mxu0 0
        %2258 = vmatpush1.bf16.msra.mxu0 0
        %2259 = vmatprep.subr.bf16.mxu0 0
        %2260 = vmatpush1.bf16.msra.mxu0 0
        %2261 = vmatprep.subr.bf16.mxu0 0
        %2262 = vmatpush1.bf16.msra.mxu0 0
        %2263 = vmatprep.subr.bf16.mxu0 0
        %2264 = vmatpush1.bf16.msra.mxu0 0
        %2265 = vmatprep.subr.bf16.mxu0 0
        %2266 = vmatpush1.bf16.msra.mxu0 0
        %2267 = vmatprep.subr.bf16.mxu0 0
        %2268 = vmatpush1.bf16.msra.mxu0 0
        %2269 = vmatprep.subr.bf16.mxu0 0
        %2270 = vmatpush1.bf16.msra.mxu0 0
        %2271 = vmatprep.subr.bf16.mxu0 0
        %2272 = vmatpush1.bf16.msra.mxu0 0
        %2273 = vmatprep.subr.bf16.mxu0 0
        %2274 = vmatpush1.bf16.msra.mxu0 0
        %2275 = vmatprep.subr.bf16.mxu0 0
        %2276 = vmatpush1.bf16.msra.mxu0 0
        %2277 = vmatprep.mubr.bf16.mxu0 0
        %2278 = vmatmul.mubr.bf16.gmra.mrb[0].mxu0 %v2209
        %v2279 = vpop.f32.mrb[0].mxu0
        %v2280 = vadd.f32 %v2191, %v2279
        %v2281 = vpop.f32.mrb[0].mxu0
        %v2282 = vpop.f32.mrb[0].mxu0
        %v2283 = vadd.f32 %v2191, %v2282
        %v2284 = vpop.f32.mrb[0].mxu0
        %2285 = vmatprep.mubr.bf16.mxu0 0
        %2286 = vmatmul.mubr.bf16.gmra.mrb[0].mxu0 %v2211
        %v2287 = vpop.f32.mrb[0].mxu0
        %v2288 = vadd.f32 %v2191, %v2287
        %v2289 = vpop.f32.mrb[0].mxu0
        %v2290 = vpop.f32.mrb[0].mxu0
        %v2291 = vadd.f32 %v2191, %v2290
        %v2292 = vpop.f32.mrb[0].mxu0
        %2293 = vmatprep.mubr.bf16.mxu0 0
        %2294 = vmatmul.mubr.bf16.gmra.mrb[0].mxu0 %v2213
        %v2295 = vpop.f32.mrb[0].mxu0
        %v2296 = vadd.f32 %v2191, %v2295
        %v2297 = vpop.f32.mrb[0].mxu0
        %v2298 = vpop.f32.mrb[0].mxu0
        %v2299 = vadd.f32 %v2191, %v2298
        %v2300 = vpop.f32.mrb[0].mxu0
        %2301 = vmatprep.mubr.bf16.mxu0 0
        %2302 = vmatmul.mubr.bf16.gmra.mrb[0].mxu0 %v2215
        %v2303 = vpop.f32.mrb[0].mxu0
        %v2304 = vadd.f32 %v2191, %v2303
        %v2305 = vpop.f32.mrb[0].mxu0
        %v2306 = vpop.f32.mrb[0].mxu0
        %v2307 = vadd.f32 %v2191, %v2306
        %v2308 = vpop.f32.mrb[0].mxu0
        %2309 = vmatprep.mubr.bf16.mxu0 0
        %2310 = vmatmul.mubr.bf16.gmra.mrb[0].mxu0 %v2217
        %v2311 = vpop.f32.mrb[0].mxu0
        %v2312 = vadd.f32 %v2191, %v2311
        %v2313 = vpop.f32.mrb[0].mxu0
        %v2314 = vpop.f32.mrb[0].mxu0
        %v2315 = vadd.f32 %v2191, %v2314
        %v2316 = vpop.f32.mrb[0].mxu0
        %2317 = vmatprep.mubr.bf16.mxu0 0
        %2318 = vmatmul.mubr.bf16.gmra.mrb[0].mxu0 %v2219
        %v2319 = vpop.f32.mrb[0].mxu0
        %v2320 = vadd.f32 %v2191, %v2319
        %v2321 = vpop.f32.mrb[0].mxu0
        %v2322 = vpop.f32.mrb[0].mxu0
        %v2323 = vadd.f32 %v2191, %v2322
        %v2324 = vpop.f32.mrb[0].mxu0
        %2325 = vmatprep.mubr.bf16.mxu0 0
        %2326 = vmatmul.mubr.bf16.gmra.mrb[0].mxu0 %v2221
        %v2327 = vpop.f32.mrb[0].mxu0
        %v2328 = vadd.f32 %v2191, %v2327
        %v2329 = vpop.f32.mrb[0].mxu0
        %v2330 = vpop.f32.mrb[0].mxu0
        %v2331 = vadd.f32 %v2191, %v2330
        %v2332 = vpop.f32.mrb[0].mxu0
        %2333 = vmatprep.mubr.bf16.mxu0 0
        %2334 = vmatmul.mubr.bf16.gmra.mrb[0].mxu0 %v2223
        %v2335 = vpop.f32.mrb[0].mxu0
        %v2336 = vadd.f32 %v2191, %v2335
        %v2337 = vpop.f32.mrb[0].mxu0
        %v2338 = vpop.f32.mrb[0].mxu0
        %v2339 = vadd.f32 %v2191, %v2338
        %v2340 = vpop.f32.mrb[0].mxu0
        %2341 = vmatprep.mubr.bf16.mxu0 0
        %2342 = vmatmul.mubr.bf16.gmra.mrb[0].mxu0 %v2225
        %v2343 = vpop.f32.mrb[0].mxu0
        %v2344 = vadd.f32 %v2191, %v2343
        %v2345 = vpop.f32.mrb[0].mxu0
        %v2346 = vpop.f32.mrb[0].mxu0
        %v2347 = vadd.f32 %v2191, %v2346
        %v2348 = vpop.f32.mrb[0].mxu0
        %2349 = vmatprep.mubr.bf16.mxu0 0
        %2350 = vmatmul.mubr.bf16.gmra.mrb[0].mxu0 %v2227
        %v2351 = vpop.f32.mrb[0].mxu0
        %v2352 = vadd.f32 %v2191, %v2351
        %v2353 = vpop.f32.mrb[0].mxu0
        %v2354 = vpop.f32.mrb[0].mxu0
        %v2355 = vadd.f32 %v2191, %v2354
        %v2356 = vpop.f32.mrb[0].mxu0
        %2357 = vmatprep.mubr.bf16.mxu0 0
        %2358 = vmatmul.mubr.bf16.gmra.mrb[0].mxu0 %v2229
        %v2359 = vpop.f32.mrb[0].mxu0
        %v2360 = vadd.f32 %v2191, %v2359
        %v2361 = vpop.f32.mrb[0].mxu0
        %v2362 = vpop.f32.mrb[0].mxu0
        %v2363 = vadd.f32 %v2191, %v2362
        %v2364 = vpop.f32.mrb[0].mxu0
        %2365 = vmatprep.mubr.bf16.mxu0 0
        %2366 = vmatmul.mubr.bf16.gmra.mrb[0].mxu0 %v2231
        %v2367 = vpop.f32.mrb[0].mxu0
        %v2368 = vadd.f32 %v2191, %v2367
        %v2369 = vpop.f32.mrb[0].mxu0
        %v2370 = vpop.f32.mrb[0].mxu0
        %v2371 = vadd.f32 %v2191, %v2370
        %v2372 = vpop.f32.mrb[0].mxu0
        %2373 = vmatprep.mubr.bf16.mxu0 0
        %2374 = vmatmul.mubr.bf16.gmra.mrb[0].mxu0 %v2233
        %v2375 = vpop.f32.mrb[0].mxu0
        %v2376 = vadd.f32 %v2191, %v2375
        %v2377 = vpop.f32.mrb[0].mxu0
        %v2378 = vpop.f32.mrb[0].mxu0
        %v2379 = vadd.f32 %v2191, %v2378
        %v2380 = vpop.f32.mrb[0].mxu0
        %2381 = vmatprep.mubr.bf16.mxu0 0
        %2382 = vmatmul.mubr.bf16.gmra.mrb[0].mxu0 %v2235
        %v2383 = vpop.f32.mrb[0].mxu0
        %v2384 = vadd.f32 %v2191, %v2383
        %v2385 = vpop.f32.mrb[0].mxu0
        %v2386 = vpop.f32.mrb[0].mxu0
        %v2387 = vadd.f32 %v2191, %v2386
        %v2388 = vpop.f32.mrb[0].mxu0
        %2389 = vmatprep.mubr.bf16.mxu0 0
        %2390 = vmatmul.mubr.bf16.gmra.mrb[0].mxu0 %v2237
        %v2391 = vpop.f32.mrb[0].mxu0
        %v2392 = vadd.f32 %v2191, %v2391
        %v2393 = vpop.f32.mrb[0].mxu0
        %v2394 = vpop.f32.mrb[0].mxu0
        %v2395 = vadd.f32 %v2191, %v2394
        %v2396 = vpop.f32.mrb[0].mxu0
        %2397 = vmatprep.mubr.bf16.mxu0 0
        %2398 = vmatmul.mubr.bf16.gmra.mrb[0].mxu0 %v2239
        %v2399 = vpop.f32.mrb[0].mxu0
        %v2400 = vadd.f32 %v2191, %v2399
        %v2401 = vpop.f32.mrb[0].mxu0
        %v2402 = vpop.f32.mrb[0].mxu0
        %v2403 = vadd.f32 %v2191, %v2402
        %v2404 = vpop.f32.mrb[0].mxu0
        %2405 = vdwg.mxu0
        %2406 = vst [vmem:[%s215] sm:$0xff] %v2280
        %2407 = vst [vmem:[%s215 + $0x8] sm:$0xff] %v2283
        %2408 = vst [vmem:[%s215 + $0x10] sm:$0xff] %v2288
        %2409 = vst [vmem:[%s215 + $0x18] sm:$0xff] %v2291
        %2410 = vst [vmem:[%s215 + $0x20] sm:$0xff] %v2296
        %2411 = vst [vmem:[%s215 + $0x28] sm:$0xff] %v2299
        %2412 = vst [vmem:[%s215 + $0x30] sm:$0xff] %v2304
        %2413 = vst [vmem:[%s215 + $0x38] sm:$0xff] %v2307
        %2414 = vst [vmem:[%s215 + $0x40] sm:$0xff] %v2312
        %2415 = vst [vmem:[%s215 + $0x48] sm:$0xff] %v2315
        %2416 = vst [vmem:[%s215 + $0x50] sm:$0xff] %v2320
        %2417 = vst [vmem:[%s215 + $0x58] sm:$0xff] %v2323
        %2418 = vst [vmem:[%s215 + $0x60] sm:$0xff] %v2328
        %2419 = vst [vmem:[%s215 + $0x68] sm:$0xff] %v2331
        %2420 = vst [vmem:[%s215 + $0x70] sm:$0xff] %v2336
        %2421 = vst [vmem:[%s215 + $0x78] sm:$0xff] %v2339
        %2422 = vst [vmem:[%s215 + $0x80] sm:$0xff] %v2344
        %2423 = vst [vmem:[%s215 + $0x88] sm:$0xff] %v2347
        %2424 = vst [vmem:[%s215 + $0x90] sm:$0xff] %v2352
        %2425 = vst [vmem:[%s215 + $0x98] sm:$0xff] %v2355
        %2426 = vst [vmem:[%s215 + $0xa0] sm:$0xff] %v2360
        %2427 = vst [vmem:[%s215 + $0xa8] sm:$0xff] %v2363
        %2428 = vst [vmem:[%s215 + $0xb0] sm:$0xff] %v2368
        %2429 = vst [vmem:[%s215 + $0xb8] sm:$0xff] %v2371
        %2430 = vst [vmem:[%s215 + $0xc0] sm:$0xff] %v2376
        %2431 = vst [vmem:[%s215 + $0xc8] sm:$0xff] %v2379
        %2432 = vst [vmem:[%s215 + $0xd0] sm:$0xff] %v2384
        %2433 = vst [vmem:[%s215 + $0xd8] sm:$0xff] %v2387
        %2434 = vst [vmem:[%s215 + $0xe0] sm:$0xff] %v2392
        %2435 = vst [vmem:[%s215 + $0xe8] sm:$0xff] %v2395
        %2436 = vst [vmem:[%s215 + $0xf0] sm:$0xff] %v2400
        %2437 = vst [vmem:[%s215 + $0xf8] sm:$0xff] %v2403
        %s2438 = sand.u32 %s97, 1
        %s2439 = scalar_lea.sflag [#allocation4], %s2438
        %s2440 = sand.u32 %s97, 1
        %s2441 = smul.addr %s2440, 256
        %s2442 = scalar_lea.vmem [#allocation8], %s2441
        // Predicated region
        $region45: #{tpu_custom_call.1} parent=31 // pred_check
          %p2443 = pneg %p107
        $region46: #{tpu_custom_call.1} parent=31 // pred_check_branch
          %2445 = sbr.rel (%p2443) target = $region48
        $region47: #{tpu_custom_call.1} parent=31 // pred_region
          %s2447 = ssub.s32 4096, 4096
          %2448 = vsyncadd %s2439, %s2447
          %s2449 = smul.addr %s21, 32
          %s2450 = smul.addr %s2449, 128
          %s2451 = scalar_lea.hbm %s3, %s2450
          %s2452 = sshll.u32 %s2442, 4
          %s2453 = int_to_ptr.vmem [resolvable:$true] %s2452
          %2458 = dma.vmem_to_hbm [thread:$0]  %s2453, 4096, %s2451, %s2439, 128, 128, 8
        $region48: #{tpu_custom_call.1} parent=31 // pred_fallthru
          _
      $region32: #{tpu_custom_call.1} parent=5 // pred_fallthru
        _
      %p2459 = scmp.le.s32.totalorder 2, %s16
      // Predicated region
      $region49: #{tpu_custom_call.1} parent=5 // pred_check
        %p2460 = pneg %p2459
      $region50: #{tpu_custom_call.1} parent=5 // pred_check_branch
        %2462 = sbr.rel (%p2460) target = $region52
      $region51: #{tpu_custom_call.1} parent=5 // pred_region
        %s2463 = ssub.s32 %s16, 2
        // Predicated region
        $region53: #{tpu_custom_call.1} parent=51 // pred_check
          %p2464 = pneg %p113
        $region54: #{tpu_custom_call.1} parent=51 // pred_check_branch
          %2466 = sbr.rel (%p2464) target = $region56
        $region55: #{tpu_custom_call.1} parent=51 // pred_region
          %s2467 = sand.u32 %s98, 1
          %s2468 = scalar_lea.sflag [#allocation4], %s2467
          %s2469 = sand.u32 %s98, 1
          %s2470 = smul.addr %s2469, 256
          %s2471 = scalar_lea.vmem [#allocation8], %s2470
          %2472 = dma.done %s2468, 4096
        $region56: #{tpu_custom_call.1} parent=51 // pred_fallthru
          _
      $region52: #{tpu_custom_call.1} parent=5 // pred_fallthru
        _
    $region6: #{tpu_custom_call.1} parent=1 // loop_footer
      %s20 = sadd.s32 1, %s16
    $region7: #{tpu_custom_call.1} parent=1 // loop_footer_branch
      %15 = sbr.rel target = $region3
    $region8: #{tpu_custom_call.1} parent=1 // loop_exit
      _
    %2473 = vsyncpa [#allocation3], 1
    %s2474 = scalar_lea.sflag [#allocation3], 1
    %2475 = vsyncpa %s2474, 1
    %2476 = vsyncpa [#allocation6], 1
    %2477 = vsyncpa [#allocation4], 1
    %s2478 = scalar_lea.sflag [#allocation4], 1
    %2479 = vsyncpa %s2478, 1

</llo_original>
